<compile_context>
chip_gen: v6e
topology: v6e:2x2x1
jax: 0.10.0
libtpu: 0.0.40
codegen_flags: <defaults>
</compile_context>

<pallas_src>
import functools

import jax
import jax.numpy as jnp
from jax.experimental import pallas as pl
from jax.experimental.pallas import tpu as pltpu


_PADR = 8  # sublane-aligned pad band (rows) above and below the conv scratch


# ----------------------------------------------------------------------------
# Pallas kernel: entire Fusion forward for one batch sample
# ----------------------------------------------------------------------------
def _fusion_kernel(*refs, H, W, C, n_rcu, n_raw):
    WC = W * C

    # --- unpack refs (order must match the wrapper's arg order) -------------
    idx = 0
    x_rcu = refs[idx:idx + n_rcu]; idx += n_rcu          # inputs run through own RCU
    x_raw = refs[idx:idx + n_raw]; idx += n_raw          # inputs added raw (previous)
    wsets = []
    for _ in range(n_rcu + 1):                           # per-input RCUs + res_conv2
        wsets.append(refs[idx:idx + 4]); idx += 4        # (m1, b1, m2, b2)
    ah_ref = refs[idx]                                   # (H2, H) bf16 row-interp
    mw_ref = refs[idx + 1]                               # (WC, W2*C) bf16 col-interp
    out_ref = refs[idx + 2]                              # (H2, W2*C)
    xpad_ref = refs[idx + 3]                             # VMEM scratch (H+2*_PADR, WC)

    # Zero only the two pad bands (aligned 8-row stores).  They are never
    # overwritten by the interior writes and supply the conv's implicit zero
    # padding along H.  Done every step => correct per-core under megacore.
    zband = jnp.zeros((_PADR, WC), jnp.float32)
    xpad_ref[0:_PADR, :] = zband
    xpad_ref[_PADR + H:_PADR + H + _PADR, :] = zband

    def conv3x3(xin, m_ref, b_ref, relu_out):
        # xin: (H, WC) f32, lane index = w*C + c.
        # dx taps + Cin->Cout contraction are folded into the stacked banded
        # weight m_ref (3*WC, WC); the 3 dy taps come from row-shifted reads of
        # the zero-padded scratch, concatenated on the lane axis -> one K=3*WC
        # bf16 MXU matmul with f32 accumulation.
        xpad_ref[_PADR:_PADR + H, :] = xin               # aligned interior write
        dn = xpad_ref[_PADR - 1:_PADR - 1 + H, :]        # input row h-1 (zero at h=0)
        up = xpad_ref[_PADR + 1:_PADR + 1 + H, :]        # input row h+1 (zero at h=H-1)
        xcat = jnp.concatenate([dn, xin, up], axis=1).astype(jnp.bfloat16)
        acc = b_ref[...].astype(jnp.float32) + jnp.dot(
            xcat, m_ref[...], preferred_element_type=jnp.float32)
        if relu_out:
            acc = jnp.maximum(acc, 0.0)
        return acc                                        # (H, WC) f32

    def rcu(x, wset):
        # out = conv2(relu(conv1(relu(x)))) + x
        m1, b1, m2, b2 = wset
        h1 = conv3x3(jnp.maximum(x, 0.0), m1, b1, relu_out=True)
        h2 = conv3x3(h1, m2, b2, relu_out=False)
        return h2 + x

    # stage 1: per-modality RCUs + raw additions (previous stage), all in-reg
    stage1 = None
    for i in range(n_rcu):
        y = rcu(x_rcu[i][...].astype(jnp.float32), wsets[i])
        stage1 = y if stage1 is None else stage1 + y
    for r in x_raw:
        stage1 = stage1 + r[...].astype(jnp.float32)

    # stage 2: final RCU
    stage2 = rcu(stage1, wsets[n_rcu])                    # (H, WC) f32

    # bilinear x2 upsample (align_corners=True) as two lane-dense bf16 matmuls
    up2 = jnp.dot(ah_ref[...], stage2.astype(jnp.bfloat16),
                  preferred_element_type=jnp.float32)     # (H2, WC)
    out = jnp.dot(up2.astype(jnp.bfloat16), mw_ref[...],
                  preferred_element_type=jnp.float32)     # (H2, W2*C)
    out_ref[...] = out.astype(out_ref.dtype)


# ----------------------------------------------------------------------------
# Wrapper-side weight / interpolation-matrix preparation (tiny, one-time glue)
# ----------------------------------------------------------------------------
def _rcu_band_weights(w, W):
    """Fold the 3 dx taps + Cin->Cout contraction of a 3x3 HWIO kernel
    (3,3,C,C) into 3 banded matrices of shape (W*C, W*C), one per dy tap."""
    C = w.shape[2]
    wi = jnp.arange(W)[:, None]            # input column
    wo = jnp.arange(W)[None, :]            # output column
    dx = wi - wo + 1                       # which kernel x-tap maps wi -> wo
    valid = ((dx >= 0) & (dx <= 2)).astype(w.dtype)
    band = w[:, jnp.clip(dx, 0, 2)] * valid[None, :, :, None, None]
    # (ky, wi, wo, cin, cout) -> (ky, wi*C + cin, wo*C + cout)
    band = jnp.transpose(band, (0, 1, 3, 2, 4)).reshape(3, W * C, W * C)
    return band


def _interp_matrix(n_in, n_out):
    # PyTorch bilinear interpolation weights, align_corners=True.
    dst = jnp.arange(n_out, dtype=jnp.float32)
    src = dst * (n_in - 1) / (n_out - 1)
    lo = jnp.clip(jnp.floor(src).astype(jnp.int32), 0, n_in - 1)
    hi = jnp.clip(lo + 1, 0, n_in - 1)
    w_hi = src - lo.astype(jnp.float32)
    w_lo = 1.0 - w_hi
    rows = jnp.arange(n_out)
    m = jnp.zeros((n_out, n_in), jnp.float32)
    m = m.at[rows, lo].add(w_lo)
    m = m.at[rows, hi].add(w_hi)
    return m


def _col_interp_matrix(W, C):
    # Mw[(w, c), (w2, c2)] = Aw[w2, w] * (c == c2)   ->  (W*C, 2*W*C)
    aw = _interp_matrix(W, 2 * W)                       # (W2, W)
    eye = jnp.eye(C, dtype=jnp.float32)
    mw = aw.T[:, None, :, None] * eye[None, :, None, :]
    return mw.reshape(W * C, 2 * W * C)


# ----------------------------------------------------------------------------
# Fusion forward (NCHW in / NCHW out, matching the PyTorch module)
# ----------------------------------------------------------------------------
def fusion_forward(rgb_nchw, lidar_nchw, params, previous_stage_nchw=None,
                   modal='cross_fusion'):
    B, C, H, W = rgb_nchw.shape
    WC, H2, W2 = W * C, 2 * H, 2 * W
    dtype = rgb_nchw.dtype

    def lane_dense(x_nchw):                # NCHW -> (B, H, W*C), lane = w*C + c
        return jnp.transpose(x_nchw, (0, 2, 3, 1)).reshape(B, H, WC)

    rcu_in, rcu_p = [], []
    if modal in ('rgb', 'cross_fusion'):
        rcu_in.append(lane_dense(rgb_nchw)); rcu_p.append(params['res_conv_rgb'])
    if modal in ('lidar', 'cross_fusion'):
        rcu_in.append(lane_dense(lidar_nchw)); rcu_p.append(params['res_conv_xyz'])
    if modal not in ('rgb', 'lidar', 'cross_fusion'):
        raise ValueError(f"unknown modal: {modal}")

    raw_in = []
    if previous_stage_nchw is not None:    # don't DMA a zeros tensor when absent
        raw_in.append(lane_dense(previous_stage_nchw))

    def conv_args(p):
        # stacked (3*WC, WC) bf16 band weights (dy-major) + f32 tiled biases
        m1 = _rcu_band_weights(p['w1'], W).reshape(3 * WC, WC).astype(jnp.bfloat16)
        m2 = _rcu_band_weights(p['w2'], W).reshape(3 * WC, WC).astype(jnp.bfloat16)
        b1 = jnp.tile(p['b1'], W).reshape(1, WC)
        b2 = jnp.tile(p['b2'], W).reshape(1, WC)
        return [m1, b1, m2, b2]

    weight_args = []
    for p in rcu_p + [params['res_conv2']]:
        weight_args += conv_args(p)

    ah = _interp_matrix(H, H2).astype(jnp.bfloat16)          # (H2, H)
    mw = _col_interp_matrix(W, C).astype(jnp.bfloat16)       # (WC, W2*C)

    n_rcu, n_raw = len(rcu_in), len(raw_in)
    kernel = functools.partial(_fusion_kernel, H=H, W=W, C=C,
                               n_rcu=n_rcu, n_raw=n_raw)

    once = pl.Buffered(1)   # constant-index blocks: single buffer, fetched once
    x_spec = pl.BlockSpec((None, H, WC), lambda b: (b, 0, 0))
    band_spec = pl.BlockSpec((3 * WC, WC), lambda b: (0, 0), pipeline_mode=once)
    bias_spec = pl.BlockSpec((1, WC), lambda b: (0, 0), pipeline_mode=once)
    ah_spec = pl.BlockSpec((H2, H), lambda b: (0, 0), pipeline_mode=once)
    mw_spec = pl.BlockSpec((WC, W2 * C), lambda b: (0, 0), pipeline_mode=once)

    in_specs = ([x_spec] * (n_rcu + n_raw)
                + [band_spec, bias_spec, band_spec, bias_spec] * (n_rcu + 1)
                + [ah_spec, mw_spec])

    # advisory cost estimate so XLA schedules the surrounding relayouts sanely
    n_conv = 2 * (n_rcu + 1)
    flops = B * (n_conv * 2 * H * (3 * WC) * WC
                 + 2 * H2 * H * WC + 2 * H2 * WC * (W2 * C))
    bytes_accessed = ((n_rcu + n_raw) * B * H * WC * 4
                      + (n_rcu + 1) * 2 * (3 * WC * WC * 2 + WC * 4)
                      + H2 * H * 2 + WC * W2 * C * 2
                      + B * H2 * W2 * C * 4)
    cost = pl.CostEstimate(flops=flops, transcendentals=0,
                           bytes_accessed=bytes_accessed)

    out = pl.pallas_call(
        kernel,
        out_shape=jax.ShapeDtypeStruct((B, H2, W2 * C), dtype),
        grid_spec=pltpu.PrefetchScalarGridSpec(
            num_scalar_prefetch=0,
            grid=(B,),
            in_specs=in_specs,
            out_specs=pl.BlockSpec((None, H2, W2 * C), lambda b: (b, 0, 0)),
            scratch_shapes=[pltpu.VMEM((H + 2 * _PADR, WC), jnp.float32)],
        ),
        compiler_params=pltpu.CompilerParams(
            dimension_semantics=("parallel",)),   # independent per-sample steps
        cost_estimate=cost,
    )(*rcu_in, *raw_in, *weight_args, ah, mw)

    # lane-dense (B, H2, W2*C) -> NCHW
    return jnp.transpose(out.reshape(B, H2, W2, C), (0, 3, 1, 2))


# ----------------------------------------------------------------------------
# Deterministic parameter init (synthetic, not a checkpoint load)
# ----------------------------------------------------------------------------
def init_params(key, features):
    def conv_params(k):
        k1, k2 = jax.random.split(k)
        fan_in = features * 9
        w = jax.random.normal(k1, (3, 3, features, features),
                              jnp.float32) / jnp.sqrt(float(fan_in))
        b = jax.random.normal(k2, (features,), jnp.float32) * 0.01
        return w, b

    params = {}
    names = ['res_conv_xyz', 'res_conv_rgb', 'res_conv2']
    for name, k in zip(names, jax.random.split(key, len(names))):
        ka, kb = jax.random.split(k)
        w1, b1 = conv_params(ka)
        w2, b2 = conv_params(kb)
        params[name] = dict(w1=w1, b1=b1, w2=w2, b2=b2)
    return params


# ----------------------------------------------------------------------------
# Pure-JAX f32 reference (for correctness check)
# ----------------------------------------------------------------------------
def _conv_ref(x, w, b):
    y = jax.lax.conv_general_dilated(
        x, w, (1, 1), 'SAME', dimension_numbers=('NHWC', 'HWIO', 'NHWC'))
    return y + b.reshape(1, 1, 1, -1)


def _rcu_ref(x, p):
    out = jax.nn.relu(x)
    out = _conv_ref(out, p['w1'], p['b1'])
    out = jax.nn.relu(out)
    out = _conv_ref(out, p['w2'], p['b2'])
    return out + x


def fusion_ref(rgb_nchw, lidar_nchw, params, previous=None,
               modal='cross_fusion'):
    rgb = jnp.transpose(rgb_nchw, (0, 2, 3, 1))
    lidar = jnp.transpose(lidar_nchw, (0, 2, 3, 1))
    prev = (jnp.zeros_like(rgb) if previous is None
            else jnp.transpose(previous, (0, 2, 3, 1)))
    if modal == 'rgb':
        o_rgb = _rcu_ref(rgb, params['res_conv_rgb']); o_lid = jnp.zeros_like(o_rgb)
    elif modal == 'lidar':
        o_lid = _rcu_ref(lidar, params['res_conv_xyz']); o_rgb = jnp.zeros_like(o_lid)
    else:
        o_rgb = _rcu_ref(rgb, params['res_conv_rgb'])
        o_lid = _rcu_ref(lidar, params['res_conv_xyz'])
    s1 = o_lid + o_rgb + prev
    s2 = _rcu_ref(s1, params['res_conv2'])
    B, H, W, C = s2.shape
    ah = _interp_matrix(H, 2 * H)
    aw = _interp_matrix(W, 2 * W)
    out = jnp.einsum('ah,bhwc->bawc', ah, s2)
    out = jnp.einsum('xw,bawc->baxc', aw, out)
    return jnp.transpose(out, (0, 3, 1, 2))


# ----------------------------------------------------------------------------
if __name__ == "__main__":
    key = jax.random.PRNGKey(0)
    kp, kr, kl, kv = jax.random.split(key, 4)

    resample_dim, B, H, W = 8, 2, 16, 16      # W * C == 128 -> fully lane-dense
    params = init_params(kp, resample_dim)
    rgb = jax.random.normal(kr, (B, resample_dim, H, W), jnp.float32)
    lidar = jax.random.normal(kl, (B, resample_dim, H, W), jnp.float32)
    prev = jax.random.normal(kv, (B, resample_dim, H, W), jnp.float32)

    # bf16 MXU operands -> looser tolerance than the old f32 path
    ATOL, RTOL = 1.5e-1, 5e-2

    # cross_fusion, no previous stage
    out = jax.block_until_ready(
        fusion_forward(rgb, lidar, params, None, 'cross_fusion'))
    ref = fusion_ref(rgb, lidar, params, None, 'cross_fusion')
    assert out.shape == (B, resample_dim, 2 * H, 2 * W), out.shape
    err = float(jnp.max(jnp.abs(out - ref)))
    assert jnp.allclose(out, ref, atol=ATOL, rtol=RTOL), err

    # cross_fusion with a previous stage (exercises the raw-input path)
    out2 = jax.block_until_ready(
        fusion_forward(rgb, lidar, params, prev, 'cross_fusion'))
    ref2 = fusion_ref(rgb, lidar, params, prev, 'cross_fusion')
    err2 = float(jnp.max(jnp.abs(out2 - ref2)))
    assert jnp.allclose(out2, ref2, atol=ATOL, rtol=RTOL), err2

    print("KERNEL_OK")
</pallas_src>

<mosaic_0001>
module attributes {stable_mosaic.version = 11 : i64} {
  func.func @_fusion_kernel(%arg0: i32, %arg1: memref<1x16x128xf32, #tpu.memory_space<vmem>>, %arg2: memref<1x16x128xf32, #tpu.memory_space<vmem>>, %arg3: memref<384x128xbf16, #tpu.memory_space<vmem>>, %arg4: memref<1x128xf32, #tpu.memory_space<vmem>>, %arg5: memref<384x128xbf16, #tpu.memory_space<vmem>>, %arg6: memref<1x128xf32, #tpu.memory_space<vmem>>, %arg7: memref<384x128xbf16, #tpu.memory_space<vmem>>, %arg8: memref<1x128xf32, #tpu.memory_space<vmem>>, %arg9: memref<384x128xbf16, #tpu.memory_space<vmem>>, %arg10: memref<1x128xf32, #tpu.memory_space<vmem>>, %arg11: memref<384x128xbf16, #tpu.memory_space<vmem>>, %arg12: memref<1x128xf32, #tpu.memory_space<vmem>>, %arg13: memref<384x128xbf16, #tpu.memory_space<vmem>>, %arg14: memref<1x128xf32, #tpu.memory_space<vmem>>, %arg15: memref<32x16xbf16, #tpu.memory_space<vmem>>, %arg16: memref<128x256xbf16, #tpu.memory_space<vmem>>, %arg17: memref<1x32x256xf32, #tpu.memory_space<vmem>>, %arg18: memref<32x128xf32, #tpu.memory_space<vmem>>) attributes {dimension_semantics = [#tpu.dimension_semantics<parallel>], iteration_bounds = array<i64: 2>, scalar_prefetch = 0 : i64, scratch_operands = 1 : i64, tpu.core_type = #tpu.core_type<tc>, window_params = [{transform_indices = @transform_0, window_bounds = array<i64: 1, 16, 128>}, {transform_indices = @transform_1, window_bounds = array<i64: 1, 16, 128>}, {pipeline_mode = #tpu.pipeline_mode<synchronous>, transform_indices = @transform_2, window_bounds = array<i64: 384, 128>}, {pipeline_mode = #tpu.pipeline_mode<synchronous>, transform_indices = @transform_3, window_bounds = array<i64: 1, 128>}, {pipeline_mode = #tpu.pipeline_mode<synchronous>, transform_indices = @transform_4, window_bounds = array<i64: 384, 128>}, {pipeline_mode = #tpu.pipeline_mode<synchronous>, transform_indices = @transform_5, window_bounds = array<i64: 1, 128>}, {pipeline_mode = #tpu.pipeline_mode<synchronous>, transform_indices = @transform_6, window_bounds = array<i64: 384, 128>}, {pipeline_mode = #tpu.pipeline_mode<synchronous>, transform_indices = @transform_7, window_bounds = array<i64: 1, 128>}, {pipeline_mode = #tpu.pipeline_mode<synchronous>, transform_indices = @transform_8, window_bounds = array<i64: 384, 128>}, {pipeline_mode = #tpu.pipeline_mode<synchronous>, transform_indices = @transform_9, window_bounds = array<i64: 1, 128>}, {pipeline_mode = #tpu.pipeline_mode<synchronous>, transform_indices = @transform_10, window_bounds = array<i64: 384, 128>}, {pipeline_mode = #tpu.pipeline_mode<synchronous>, transform_indices = @transform_11, window_bounds = array<i64: 1, 128>}, {pipeline_mode = #tpu.pipeline_mode<synchronous>, transform_indices = @transform_12, window_bounds = array<i64: 384, 128>}, {pipeline_mode = #tpu.pipeline_mode<synchronous>, transform_indices = @transform_13, window_bounds = array<i64: 1, 128>}, {pipeline_mode = #tpu.pipeline_mode<synchronous>, transform_indices = @transform_14, window_bounds = array<i64: 32, 16>}, {pipeline_mode = #tpu.pipeline_mode<synchronous>, transform_indices = @transform_15, window_bounds = array<i64: 128, 256>}, {transform_indices = @transform_16, window_bounds = array<i64: 1, 32, 256>}]} {
    %cst = arith.constant 0.000000e+00 : f32
    %0 = vector.broadcast %cst : f32 to vector<8x128xf32>
    %c0 = arith.constant 0 : index
    %c0_0 = arith.constant 0 : index
    %1 = vector.load %arg18[%c0, %c0_0] : memref<32x128xf32, #tpu.memory_space<vmem>>, vector<8x128xf32>
    tpu.vector_store %arg18[%c0, %c0_0], %0 {strides = array<i32>} : memref<32x128xf32, #tpu.memory_space<vmem>>, vector<8x128xf32>,
    %c24 = arith.constant 24 : index
    %c0_1 = arith.constant 0 : index
    %2 = vector.load %arg18[%c24, %c0_1] : memref<32x128xf32, #tpu.memory_space<vmem>>, vector<8x128xf32>
    tpu.vector_store %arg18[%c24, %c0_1], %0 {strides = array<i32>} : memref<32x128xf32, #tpu.memory_space<vmem>>, vector<8x128xf32>,
    %c0_2 = arith.constant 0 : index
    %c0_3 = arith.constant 0 : index
    %c0_4 = arith.constant 0 : index
    %3 = vector.load %arg1[%c0_2, %c0_3, %c0_4] : memref<1x16x128xf32, #tpu.memory_space<vmem>>, vector<1x16x128xf32>
    %4 = vector.shape_cast %3 : vector<1x16x128xf32> to vector<16x128xf32>
    %cst_5 = arith.constant 0.000000e+00 : f32
    %5 = vector.broadcast %cst_5 : f32 to vector<16x128xf32>
    %6 = arith.maximumf %4, %5 : vector<16x128xf32>
    %c8 = arith.constant 8 : index
    %c0_6 = arith.constant 0 : index
    %7 = vector.load %arg18[%c8, %c0_6] : memref<32x128xf32, #tpu.memory_space<vmem>>, vector<16x128xf32>
    tpu.vector_store %arg18[%c8, %c0_6], %6 {strides = array<i32>} : memref<32x128xf32, #tpu.memory_space<vmem>>, vector<16x128xf32>,
    %c7 = arith.constant 7 : index
    %c0_7 = arith.constant 0 : index
    %8 = vector.load %arg18[%c7, %c0_7] : memref<32x128xf32, #tpu.memory_space<vmem>>, vector<16x128xf32>
    %c9 = arith.constant 9 : index
    %c0_8 = arith.constant 0 : index
    %9 = vector.load %arg18[%c9, %c0_8] : memref<32x128xf32, #tpu.memory_space<vmem>>, vector<16x128xf32>
    %10 = tpu.concatenate %8, %6, %9 in 1 : vector<16x128xf32>, vector<16x128xf32>, vector<16x128xf32> -> vector<16x384xf32>
    %11 = arith.truncf %10 : vector<16x384xf32> to vector<16x384xbf16>
    %c0_9 = arith.constant 0 : index
    %c0_10 = arith.constant 0 : index
    %12 = vector.load %arg4[%c0_9, %c0_10] : memref<1x128xf32, #tpu.memory_space<vmem>>, vector<1x128xf32>
    %c0_11 = arith.constant 0 : index
    %c0_12 = arith.constant 0 : index
    %13 = vector.load %arg3[%c0_11, %c0_12] : memref<384x128xbf16, #tpu.memory_space<vmem>>, vector<384x128xbf16>
    %cst_13 = arith.constant dense<0.000000e+00> : vector<16x128xf32>
    %14 = tpu.matmul %11, %13, %cst_13 {dimension_numbers = #tpu.dot_dimension_numbers<[1], [0], [0], [1], [0, 0, 1, 1], [], []>} : vector<16x384xbf16>, vector<384x128xbf16>, vector<16x128xf32> -> vector<16x128xf32>
    %15 = vector.broadcast %12 : vector<1x128xf32> to vector<16x128xf32>
    %16 = arith.addf %15, %14 : vector<16x128xf32>
    %cst_14 = arith.constant 0.000000e+00 : f32
    %17 = vector.broadcast %cst_14 : f32 to vector<16x128xf32>
    %18 = arith.maximumf %16, %17 : vector<16x128xf32>
    %c8_15 = arith.constant 8 : index
    %c0_16 = arith.constant 0 : index
    %19 = vector.load %arg18[%c8_15, %c0_16] : memref<32x128xf32, #tpu.memory_space<vmem>>, vector<16x128xf32>
    tpu.vector_store %arg18[%c8_15, %c0_16], %18 {strides = array<i32>} : memref<32x128xf32, #tpu.memory_space<vmem>>, vector<16x128xf32>,
    %c7_17 = arith.constant 7 : index
    %c0_18 = arith.constant 0 : index
    %20 = vector.load %arg18[%c7_17, %c0_18] : memref<32x128xf32, #tpu.memory_space<vmem>>, vector<16x128xf32>
    %c9_19 = arith.constant 9 : index
    %c0_20 = arith.constant 0 : index
    %21 = vector.load %arg18[%c9_19, %c0_20] : memref<32x128xf32, #tpu.memory_space<vmem>>, vector<16x128xf32>
    %22 = tpu.concatenate %20, %18, %21 in 1 : vector<16x128xf32>, vector<16x128xf32>, vector<16x128xf32> -> vector<16x384xf32>
    %23 = arith.truncf %22 : vector<16x384xf32> to vector<16x384xbf16>
    %c0_21 = arith.constant 0 : index
    %c0_22 = arith.constant 0 : index
    %24 = vector.load %arg6[%c0_21, %c0_22] : memref<1x128xf32, #tpu.memory_space<vmem>>, vector<1x128xf32>
    %c0_23 = arith.constant 0 : index
    %c0_24 = arith.constant 0 : index
    %25 = vector.load %arg5[%c0_23, %c0_24] : memref<384x128xbf16, #tpu.memory_space<vmem>>, vector<384x128xbf16>
    %cst_25 = arith.constant dense<0.000000e+00> : vector<16x128xf32>
    %26 = tpu.matmul %23, %25, %cst_25 {dimension_numbers = #tpu.dot_dimension_numbers<[1], [0], [0], [1], [0, 0, 1, 1], [], []>} : vector<16x384xbf16>, vector<384x128xbf16>, vector<16x128xf32> -> vector<16x128xf32>
    %27 = vector.broadcast %24 : vector<1x128xf32> to vector<16x128xf32>
    %28 = arith.addf %27, %26 : vector<16x128xf32>
    %29 = arith.addf %28, %4 : vector<16x128xf32>
    %c0_26 = arith.constant 0 : index
    %c0_27 = arith.constant 0 : index
    %c0_28 = arith.constant 0 : index
    %30 = vector.load %arg2[%c0_26, %c0_27, %c0_28] : memref<1x16x128xf32, #tpu.memory_space<vmem>>, vector<1x16x128xf32>
    %31 = vector.shape_cast %30 : vector<1x16x128xf32> to vector<16x128xf32>
    %cst_29 = arith.constant 0.000000e+00 : f32
    %32 = vector.broadcast %cst_29 : f32 to vector<16x128xf32>
    %33 = arith.maximumf %31, %32 : vector<16x128xf32>
    %c8_30 = arith.constant 8 : index
    %c0_31 = arith.constant 0 : index
    %34 = vector.load %arg18[%c8_30, %c0_31] : memref<32x128xf32, #tpu.memory_space<vmem>>, vector<16x128xf32>
    tpu.vector_store %arg18[%c8_30, %c0_31], %33 {strides = array<i32>} : memref<32x128xf32, #tpu.memory_space<vmem>>, vector<16x128xf32>,
    %c7_32 = arith.constant 7 : index
    %c0_33 = arith.constant 0 : index
    %35 = vector.load %arg18[%c7_32, %c0_33] : memref<32x128xf32, #tpu.memory_space<vmem>>, vector<16x128xf32>
    %c9_34 = arith.constant 9 : index
    %c0_35 = arith.constant 0 : index
    %36 = vector.load %arg18[%c9_34, %c0_35] : memref<32x128xf32, #tpu.memory_space<vmem>>, vector<16x128xf32>
    %37 = tpu.concatenate %35, %33, %36 in 1 : vector<16x128xf32>, vector<16x128xf32>, vector<16x128xf32> -> vector<16x384xf32>
    %38 = arith.truncf %37 : vector<16x384xf32> to vector<16x384xbf16>
    %c0_36 = arith.constant 0 : index
    %c0_37 = arith.constant 0 : index
    %39 = vector.load %arg8[%c0_36, %c0_37] : memref<1x128xf32, #tpu.memory_space<vmem>>, vector<1x128xf32>
    %c0_38 = arith.constant 0 : index
    %c0_39 = arith.constant 0 : index
    %40 = vector.load %arg7[%c0_38, %c0_39] : memref<384x128xbf16, #tpu.memory_space<vmem>>, vector<384x128xbf16>
    %cst_40 = arith.constant dense<0.000000e+00> : vector<16x128xf32>
    %41 = tpu.matmul %38, %40, %cst_40 {dimension_numbers = #tpu.dot_dimension_numbers<[1], [0], [0], [1], [0, 0, 1, 1], [], []>} : vector<16x384xbf16>, vector<384x128xbf16>, vector<16x128xf32> -> vector<16x128xf32>
    %42 = vector.broadcast %39 : vector<1x128xf32> to vector<16x128xf32>
    %43 = arith.addf %42, %41 : vector<16x128xf32>
    %cst_41 = arith.constant 0.000000e+00 : f32
    %44 = vector.broadcast %cst_41 : f32 to vector<16x128xf32>
    %45 = arith.maximumf %43, %44 : vector<16x128xf32>
    %c8_42 = arith.constant 8 : index
    %c0_43 = arith.constant 0 : index
    %46 = vector.load %arg18[%c8_42, %c0_43] : memref<32x128xf32, #tpu.memory_space<vmem>>, vector<16x128xf32>
    tpu.vector_store %arg18[%c8_42, %c0_43], %45 {strides = array<i32>} : memref<32x128xf32, #tpu.memory_space<vmem>>, vector<16x128xf32>,
    %c7_44 = arith.constant 7 : index
    %c0_45 = arith.constant 0 : index
    %47 = vector.load %arg18[%c7_44, %c0_45] : memref<32x128xf32, #tpu.memory_space<vmem>>, vector<16x128xf32>
    %c9_46 = arith.constant 9 : index
    %c0_47 = arith.constant 0 : index
    %48 = vector.load %arg18[%c9_46, %c0_47] : memref<32x128xf32, #tpu.memory_space<vmem>>, vector<16x128xf32>
    %49 = tpu.concatenate %47, %45, %48 in 1 : vector<16x128xf32>, vector<16x128xf32>, vector<16x128xf32> -> vector<16x384xf32>
    %50 = arith.truncf %49 : vector<16x384xf32> to vector<16x384xbf16>
    %c0_48 = arith.constant 0 : index
    %c0_49 = arith.constant 0 : index
    %51 = vector.load %arg10[%c0_48, %c0_49] : memref<1x128xf32, #tpu.memory_space<vmem>>, vector<1x128xf32>
    %c0_50 = arith.constant 0 : index
    %c0_51 = arith.constant 0 : index
    %52 = vector.load %arg9[%c0_50, %c0_51] : memref<384x128xbf16, #tpu.memory_space<vmem>>, vector<384x128xbf16>
    %cst_52 = arith.constant dense<0.000000e+00> : vector<16x128xf32>
    %53 = tpu.matmul %50, %52, %cst_52 {dimension_numbers = #tpu.dot_dimension_numbers<[1], [0], [0], [1], [0, 0, 1, 1], [], []>} : vector<16x384xbf16>, vector<384x128xbf16>, vector<16x128xf32> -> vector<16x128xf32>
    %54 = vector.broadcast %51 : vector<1x128xf32> to vector<16x128xf32>
    %55 = arith.addf %54, %53 : vector<16x128xf32>
    %56 = arith.addf %55, %31 : vector<16x128xf32>
    %57 = arith.addf %29, %56 : vector<16x128xf32>
    %cst_53 = arith.constant 0.000000e+00 : f32
    %58 = vector.broadcast %cst_53 : f32 to vector<16x128xf32>
    %59 = arith.maximumf %57, %58 : vector<16x128xf32>
    %c8_54 = arith.constant 8 : index
    %c0_55 = arith.constant 0 : index
    %60 = vector.load %arg18[%c8_54, %c0_55] : memref<32x128xf32, #tpu.memory_space<vmem>>, vector<16x128xf32>
    tpu.vector_store %arg18[%c8_54, %c0_55], %59 {strides = array<i32>} : memref<32x128xf32, #tpu.memory_space<vmem>>, vector<16x128xf32>,
    %c7_56 = arith.constant 7 : index
    %c0_57 = arith.constant 0 : index
    %61 = vector.load %arg18[%c7_56, %c0_57] : memref<32x128xf32, #tpu.memory_space<vmem>>, vector<16x128xf32>
    %c9_58 = arith.constant 9 : index
    %c0_59 = arith.constant 0 : index
    %62 = vector.load %arg18[%c9_58, %c0_59] : memref<32x128xf32, #tpu.memory_space<vmem>>, vector<16x128xf32>
    %63 = tpu.concatenate %61, %59, %62 in 1 : vector<16x128xf32>, vector<16x128xf32>, vector<16x128xf32> -> vector<16x384xf32>
    %64 = arith.truncf %63 : vector<16x384xf32> to vector<16x384xbf16>
    %c0_60 = arith.constant 0 : index
    %c0_61 = arith.constant 0 : index
    %65 = vector.load %arg12[%c0_60, %c0_61] : memref<1x128xf32, #tpu.memory_space<vmem>>, vector<1x128xf32>
    %c0_62 = arith.constant 0 : index
    %c0_63 = arith.constant 0 : index
    %66 = vector.load %arg11[%c0_62, %c0_63] : memref<384x128xbf16, #tpu.memory_space<vmem>>, vector<384x128xbf16>
    %cst_64 = arith.constant dense<0.000000e+00> : vector<16x128xf32>
    %67 = tpu.matmul %64, %66, %cst_64 {dimension_numbers = #tpu.dot_dimension_numbers<[1], [0], [0], [1], [0, 0, 1, 1], [], []>} : vector<16x384xbf16>, vector<384x128xbf16>, vector<16x128xf32> -> vector<16x128xf32>
    %68 = vector.broadcast %65 : vector<1x128xf32> to vector<16x128xf32>
    %69 = arith.addf %68, %67 : vector<16x128xf32>
    %cst_65 = arith.constant 0.000000e+00 : f32
    %70 = vector.broadcast %cst_65 : f32 to vector<16x128xf32>
    %71 = arith.maximumf %69, %70 : vector<16x128xf32>
    %c8_66 = arith.constant 8 : index
    %c0_67 = arith.constant 0 : index
    %72 = vector.load %arg18[%c8_66, %c0_67] : memref<32x128xf32, #tpu.memory_space<vmem>>, vector<16x128xf32>
    tpu.vector_store %arg18[%c8_66, %c0_67], %71 {strides = array<i32>} : memref<32x128xf32, #tpu.memory_space<vmem>>, vector<16x128xf32>,
    %c7_68 = arith.constant 7 : index
    %c0_69 = arith.constant 0 : index
    %73 = vector.load %arg18[%c7_68, %c0_69] : memref<32x128xf32, #tpu.memory_space<vmem>>, vector<16x128xf32>
    %c9_70 = arith.constant 9 : index
    %c0_71 = arith.constant 0 : index
    %74 = vector.load %arg18[%c9_70, %c0_71] : memref<32x128xf32, #tpu.memory_space<vmem>>, vector<16x128xf32>
    %75 = tpu.concatenate %73, %71, %74 in 1 : vector<16x128xf32>, vector<16x128xf32>, vector<16x128xf32> -> vector<16x384xf32>
    %76 = arith.truncf %75 : vector<16x384xf32> to vector<16x384xbf16>
    %c0_72 = arith.constant 0 : index
    %c0_73 = arith.constant 0 : index
    %77 = vector.load %arg14[%c0_72, %c0_73] : memref<1x128xf32, #tpu.memory_space<vmem>>, vector<1x128xf32>
    %c0_74 = arith.constant 0 : index
    %c0_75 = arith.constant 0 : index
    %78 = vector.load %arg13[%c0_74, %c0_75] : memref<384x128xbf16, #tpu.memory_space<vmem>>, vector<384x128xbf16>
    %cst_76 = arith.constant dense<0.000000e+00> : vector<16x128xf32>
    %79 = tpu.matmul %76, %78, %cst_76 {dimension_numbers = #tpu.dot_dimension_numbers<[1], [0], [0], [1], [0, 0, 1, 1], [], []>} : vector<16x384xbf16>, vector<384x128xbf16>, vector<16x128xf32> -> vector<16x128xf32>
    %80 = vector.broadcast %77 : vector<1x128xf32> to vector<16x128xf32>
    %81 = arith.addf %80, %79 : vector<16x128xf32>
    %82 = arith.addf %81, %57 : vector<16x128xf32>
    %c0_77 = arith.constant 0 : index
    %c0_78 = arith.constant 0 : index
    %83 = vector.load %arg15[%c0_77, %c0_78] : memref<32x16xbf16, #tpu.memory_space<vmem>>, vector<32x16xbf16>
    %84 = arith.truncf %82 : vector<16x128xf32> to vector<16x128xbf16>
    %cst_79 = arith.constant dense<0.000000e+00> : vector<32x128xf32>
    %85 = tpu.matmul %83, %84, %cst_79 {dimension_numbers = #tpu.dot_dimension_numbers<[1], [0], [0], [1], [0, 0, 1, 1], [], []>} : vector<32x16xbf16>, vector<16x128xbf16>, vector<32x128xf32> -> vector<32x128xf32>
    %86 = arith.truncf %85 : vector<32x128xf32> to vector<32x128xbf16>
    %c0_80 = arith.constant 0 : index
    %c0_81 = arith.constant 0 : index
    %87 = vector.load %arg16[%c0_80, %c0_81] : memref<128x256xbf16, #tpu.memory_space<vmem>>, vector<128x256xbf16>
    %cst_82 = arith.constant dense<0.000000e+00> : vector<32x256xf32>
    %88 = tpu.matmul %86, %87, %cst_82 {dimension_numbers = #tpu.dot_dimension_numbers<[1], [0], [0], [1], [0, 0, 1, 1], [], []>} : vector<32x128xbf16>, vector<128x256xbf16>, vector<32x256xf32> -> vector<32x256xf32>
    %c0_83 = arith.constant 0 : index
    %c0_84 = arith.constant 0 : index
    %c0_85 = arith.constant 0 : index
    %89 = vector.load %arg17[%c0_83, %c0_84, %c0_85] : memref<1x32x256xf32, #tpu.memory_space<vmem>>, vector<1x32x256xf32>
    %90 = vector.shape_cast %89 : vector<1x32x256xf32> to vector<32x256xf32>
    %91 = vector.shape_cast %88 : vector<32x256xf32> to vector<1x32x256xf32>
    tpu.vector_store %arg17[%c0_83, %c0_84, %c0_85], %91 {strides = array<i32>} : memref<1x32x256xf32, #tpu.memory_space<vmem>>, vector<1x32x256xf32>,
    return
  }
  func.func @transform_0(%arg0: i32) -> (i32, i32, i32) {
    %c0_i32 = arith.constant 0 : i32
    %c0_i32_0 = arith.constant 0 : i32
    %c0_i32_1 = arith.constant 0 : i32
    return %arg0, %c0_i32, %c0_i32_0 : i32, i32, i32
  }
  func.func @transform_1(%arg0: i32) -> (i32, i32, i32) {
    %c0_i32 = arith.constant 0 : i32
    %c0_i32_0 = arith.constant 0 : i32
    %c0_i32_1 = arith.constant 0 : i32
    return %arg0, %c0_i32, %c0_i32_0 : i32, i32, i32
  }
  func.func @transform_2(%arg0: i32) -> (i32, i32) {
    %c0_i32 = arith.constant 0 : i32
    %c0_i32_0 = arith.constant 0 : i32
    %c0_i32_1 = arith.constant 0 : i32
    return %c0_i32, %c0_i32_0 : i32, i32
  }
  func.func @transform_3(%arg0: i32) -> (i32, i32) {
    %c0_i32 = arith.constant 0 : i32
    %c0_i32_0 = arith.constant 0 : i32
    %c0_i32_1 = arith.constant 0 : i32
    return %c0_i32, %c0_i32_0 : i32, i32
  }
  func.func @transform_4(%arg0: i32) -> (i32, i32) {
    %c0_i32 = arith.constant 0 : i32
    %c0_i32_0 = arith.constant 0 : i32
    %c0_i32_1 = arith.constant 0 : i32
    return %c0_i32, %c0_i32_0 : i32, i32
  }
  func.func @transform_5(%arg0: i32) -> (i32, i32) {
    %c0_i32 = arith.constant 0 : i32
    %c0_i32_0 = arith.constant 0 : i32
    %c0_i32_1 = arith.constant 0 : i32
    return %c0_i32, %c0_i32_0 : i32, i32
  }
  func.func @transform_6(%arg0: i32) -> (i32, i32) {
    %c0_i32 = arith.constant 0 : i32
    %c0_i32_0 = arith.constant 0 : i32
    %c0_i32_1 = arith.constant 0 : i32
    return %c0_i32, %c0_i32_0 : i32, i32
  }
  func.func @transform_7(%arg0: i32) -> (i32, i32) {
    %c0_i32 = arith.constant 0 : i32
    %c0_i32_0 = arith.constant 0 : i32
    %c0_i32_1 = arith.constant 0 : i32
    return %c0_i32, %c0_i32_0 : i32, i32
  }
  func.func @transform_8(%arg0: i32) -> (i32, i32) {
    %c0_i32 = arith.constant 0 : i32
    %c0_i32_0 = arith.constant 0 : i32
    %c0_i32_1 = arith.constant 0 : i32
    return %c0_i32, %c0_i32_0 : i32, i32
  }
  func.func @transform_9(%arg0: i32) -> (i32, i32) {
    %c0_i32 = arith.constant 0 : i32
    %c0_i32_0 = arith.constant 0 : i32
    %c0_i32_1 = arith.constant 0 : i32
    return %c0_i32, %c0_i32_0 : i32, i32
  }
  func.func @transform_10(%arg0: i32) -> (i32, i32) {
    %c0_i32 = arith.constant 0 : i32
    %c0_i32_0 = arith.constant 0 : i32
    %c0_i32_1 = arith.constant 0 : i32
    return %c0_i32, %c0_i32_0 : i32, i32
  }
  func.func @transform_11(%arg0: i32) -> (i32, i32) {
    %c0_i32 = arith.constant 0 : i32
    %c0_i32_0 = arith.constant 0 : i32
    %c0_i32_1 = arith.constant 0 : i32
    return %c0_i32, %c0_i32_0 : i32, i32
  }
  func.func @transform_12(%arg0: i32) -> (i32, i32) {
    %c0_i32 = arith.constant 0 : i32
    %c0_i32_0 = arith.constant 0 : i32
    %c0_i32_1 = arith.constant 0 : i32
    return %c0_i32, %c0_i32_0 : i32, i32
  }
  func.func @transform_13(%arg0: i32) -> (i32, i32) {
    %c0_i32 = arith.constant 0 : i32
    %c0_i32_0 = arith.constant 0 : i32
    %c0_i32_1 = arith.constant 0 : i32
    return %c0_i32, %c0_i32_0 : i32, i32
  }
  func.func @transform_14(%arg0: i32) -> (i32, i32) {
    %c0_i32 = arith.constant 0 : i32
    %c0_i32_0 = arith.constant 0 : i32
    %c0_i32_1 = arith.constant 0 : i32
    return %c0_i32, %c0_i32_0 : i32, i32
  }
  func.func @transform_15(%arg0: i32) -> (i32, i32) {
    %c0_i32 = arith.constant 0 : i32
    %c0_i32_0 = arith.constant 0 : i32
    %c0_i32_1 = arith.constant 0 : i32
    return %c0_i32, %c0_i32_0 : i32, i32
  }
  func.func @transform_16(%arg0: i32) -> (i32, i32, i32) {
    %c0_i32 = arith.constant 0 : i32
    %c0_i32_0 = arith.constant 0 : i32
    %c0_i32_1 = arith.constant 0 : i32
    return %arg0, %c0_i32, %c0_i32_0 : i32, i32, i32
  }
}

</mosaic_0001>

<llo_original>
// kernel: tpu_custom_call.1
$region0: #{tpu_custom_call.1}
  #allocation0 [shape = 'u32[]', space=smem, size = 0x4, offset = 0x4, fixed_abs, tag = 'smem constant byte address 0x4 - core index']
  #allocation1 [shape = 'u32[144,128]{1,0:T(1,128)}', space=vmem, size = 0x12000, scoped, tag = 'internal scratch']
  #allocation2 [shape = 'f32[32,128]{1,0:T(8,128)}', space=vmem, size = 0x4000, scoped, tag = 'scratch operand']
  %s0 = inlined_call_operand.hbm [shape: f32[2,16,128], index: 0, kind: input, shape index: {}]
  %s1 = inlined_call_operand.hbm [shape: f32[2,16,128], index: 1, kind: input, shape index: {}]
  %s2 = inlined_call_operand.hbm [shape: bf16[384,128], index: 2, kind: input, shape index: {}]
  %s3 = inlined_call_operand.vmem [shape: f32[1,128], index: 3, kind: input, shape index: {}]
  %s4 = inlined_call_operand.hbm [shape: bf16[384,128], index: 4, kind: input, shape index: {}]
  %s5 = inlined_call_operand.vmem [shape: f32[1,128], index: 5, kind: input, shape index: {}]
  %s6 = inlined_call_operand.hbm [shape: bf16[384,128], index: 6, kind: input, shape index: {}]
  %s7 = inlined_call_operand.vmem [shape: f32[1,128], index: 7, kind: input, shape index: {}]
  %s8 = inlined_call_operand.hbm [shape: bf16[384,128], index: 8, kind: input, shape index: {}]
  %s9 = inlined_call_operand.vmem [shape: f32[1,128], index: 9, kind: input, shape index: {}]
  %s10 = inlined_call_operand.hbm [shape: bf16[384,128], index: 10, kind: input, shape index: {}]
  %s11 = inlined_call_operand.vmem [shape: f32[1,128], index: 11, kind: input, shape index: {}]
  %s12 = inlined_call_operand.hbm [shape: bf16[384,128], index: 12, kind: input, shape index: {}]
  %s13 = inlined_call_operand.vmem [shape: f32[1,128], index: 13, kind: input, shape index: {}]
  %s14 = inlined_call_operand.vmem [shape: bf16[32,16], index: 14, kind: input, shape index: {}]
  %s15 = inlined_call_operand.hbm [shape: bf16[128,256], index: 15, kind: input, shape index: {}]
  %s16 = inlined_call_operand.hbm [shape: f32[2,32,256], index: 16, kind: output, shape index: {}]
  %s17 = sld [smem:[#allocation0]]
  $region133: #{tpu_custom_call.1} parent=0
    _
  %s19 = ssub.s32 1, %s17
  %s20 = scalar_select 0, %s19, %s17
  $region1: #{tpu_custom_call.1} parent=0
    #allocation3 [shape = 'u8[16384]{0}', space=vmem, size = 0x4000, scoped, tag = 'input window, operand 0']
    #allocation4 [shape = 's32[2]{0}', space=sflag, size = 0x8, scoped, tag = 'scoped memory for tpu_custom_call.1']
    #allocation5 [shape = 's32[2]{0}', space=sflag, size = 0x8, scoped, tag = 'scoped memory for tpu_custom_call.1']
    #allocation6 [shape = 'u8[16384]{0}', space=vmem, size = 0x4000, scoped, tag = 'input window, operand 1']
    #allocation7 [shape = 's32[2]{0}', space=sflag, size = 0x8, scoped, tag = 'scoped memory for tpu_custom_call.1']
    #allocation8 [shape = 'u8[98304]{0}', space=vmem, size = 0x18000, scoped, tag = 'input window, operand 2, single buffered']
    #allocation9 [shape = 'u8[98304]{0}', space=vmem, size = 0x18000, scoped, tag = 'input window, operand 4, single buffered']
    #allocation10 [shape = 's32[1]{0}', space=sflag, size = 0x4, scoped, tag = 'scoped memory for tpu_custom_call.1']
    #allocation11 [shape = 'u8[98304]{0}', space=vmem, size = 0x18000, scoped, tag = 'input window, operand 6, single buffered']
    #allocation12 [shape = 'u8[98304]{0}', space=vmem, size = 0x18000, scoped, tag = 'input window, operand 8, single buffered']
    #allocation13 [shape = 's32[1]{0}', space=sflag, size = 0x4, scoped, tag = 'scoped memory for tpu_custom_call.1']
    #allocation14 [shape = 'u8[98304]{0}', space=vmem, size = 0x18000, scoped, tag = 'input window, operand 10, single buffered']
    #allocation15 [shape = 'u8[98304]{0}', space=vmem, size = 0x18000, scoped, tag = 'input window, operand 12, single buffered']
    #allocation16 [shape = 's32[1]{0}', space=sflag, size = 0x4, scoped, tag = 'scoped memory for tpu_custom_call.1']
    #allocation17 [shape = 'u8[65536]{0}', space=vmem, size = 0x10000, scoped, tag = 'input window, operand 15, single buffered']
    #allocation18 [shape = 'u8[65536]{0}', space=vmem, size = 0x10000, scoped, tag = 'output window, operand 0']
    %21 = vsyncpa [#allocation4], 0
    %s22 = scalar_lea.sflag [#allocation4], 1
    %23 = vsyncpa %s22, 0
    %24 = vsyncpa [#allocation7], 0
    %s25 = scalar_lea.sflag [#allocation7], 1
    %26 = vsyncpa %s25, 0
    %27 = vsyncpa [#allocation10], 0
    %28 = vsyncpa [#allocation13], 0
    %29 = vsyncpa [#allocation16], 0
    %30 = vsyncpa [#allocation5], 0
    %s31 = scalar_lea.sflag [#allocation5], 1
    %32 = vsyncpa %s31, 0
    loop: start=0, step=1, limit=4
    $region2: #{tpu_custom_call.1} parent=1 // loop_pre_header
      _
    $region3: #{tpu_custom_call.1} parent=1 // loop_header
      %s34 = sphi 0, %s38
      %p35 = scmp.ge.s32.totalorder %s34, 4
      %s44 = sphi 0, %s46
      %s47 = sphi 0, %s44
      %s48 = sphi 0, %s47
      %s64 = sphi 0, %s48
      %s70 = sphi 0, %s72
      %s73 = sphi 0, %s70
      %s74 = sphi 0, %s73
      %s90 = sphi 0, %s74
      %s94 = sphi 0, %s94
      %s96 = sphi 0, %s94
      %s97 = sphi 0, %s96
      %s111 = sphi 0, %s97
      %s115 = sphi 0, %s115
      %s117 = sphi 0, %s115
      %s118 = sphi 0, %s117
      %s132 = sphi 0, %s118
      %s136 = sphi 0, %s136
      %s138 = sphi 0, %s136
      %s139 = sphi 0, %s138
      %s153 = sphi 0, %s139
      %s157 = sphi 0, %s157
      %s159 = sphi 0, %s157
      %s160 = sphi 0, %s159
      %s174 = sphi 0, %s160
      %s178 = sphi 0, %s178
      %s180 = sphi 0, %s178
      %s181 = sphi 0, %s180
      %s195 = sphi 0, %s181
      %s199 = sphi 0, %s199
      %s201 = sphi 0, %s199
      %s202 = sphi 0, %s201
      %s216 = sphi 0, %s202
      %s220 = sphi 0, %s220
      %s222 = sphi 0, %s220
      %s223 = sphi 0, %s222
      %s237 = sphi 0, %s223
      %s241 = sphi 0, %s241
      %s243 = sphi 0, %s241
      %s244 = sphi 0, %s243
      %s258 = sphi 0, %s244
      %s262 = sphi 0, %s262
      %s264 = sphi 0, %s262
      %s265 = sphi 0, %s264
      %s279 = sphi 0, %s265
      %s283 = sphi 0, %s283
      %s285 = sphi 0, %s283
      %s286 = sphi 0, %s285
      %s300 = sphi 0, %s286
      %s304 = sphi 0, %s304
      %s306 = sphi 0, %s304
      %s307 = sphi 0, %s306
      %s321 = sphi 0, %s307
      %s325 = sphi 0, %s325
      %s327 = sphi 0, %s325
      %s328 = sphi 0, %s327
      %s342 = sphi 0, %s328
      %s346 = sphi 0, %s346
      %s348 = sphi 0, %s346
      %s349 = sphi 0, %s348
      %s363 = sphi 0, %s349
      %s367 = sphi 0, %s367
      %s369 = sphi 0, %s367
      %s370 = sphi 0, %s369
      %s384 = sphi 0, %s370
      %s390 = sphi 0, %s392
      %s393 = sphi 0, %s390
      %s394 = sphi 0, %s393
      %s410 = sphi 0, %s394
    $region4: #{tpu_custom_call.1} parent=1 // loop_header_branch
      %37 = sbr.rel (%p35) target = $region8
    $region5: #{tpu_custom_call.1} parent=1 // loop_body
      %s39 = ssub.s32 %s34, 1
      %s40 = ssub.s32 %s34, 2
      %s41 = sadd.s32 %s34, 1
      %s42 = ssub.s32 %s34, %s41
      %p43 = scmp.eq.s32.totalorder %s42, 0
      %s45 = sadd.s32 %s44, 1
      %s46 = scalar_select %p43, %s44, %s45
      %p49 = pneg %p43
      %p50 = scmp.eq.s32.totalorder %s34, 1
      %p51 = por %p49, %p50
      %p52 = scmp.ne.s32.totalorder %s44, %s47
      %p53 = scmp.eq.s32.totalorder %s34, 0
      %p54 = por %p52, %p53
      %p55 = scmp.ne.s32.totalorder %s44, %s47
      %p56 = scmp.eq.s32.totalorder %s39, 1
      %p57 = por %p55, %p56
      %p58 = scmp.ne.s32.totalorder %s47, %s48
      %p59 = scmp.eq.s32.totalorder %s39, 0
      %p60 = por %p58, %p59
      %p61 = scmp.ne.s32.totalorder %s47, %s48
      %p62 = scmp.eq.s32.totalorder %s40, 1
      %p63 = por %p61, %p62
      %p65 = scmp.ne.s32.totalorder %s48, %s64
      %p66 = scmp.eq.s32.totalorder %s40, 0
      %p67 = por %p65, %p66
      %s68 = ssub.s32 %s34, %s41
      %p69 = scmp.eq.s32.totalorder %s68, 0
      %s71 = sadd.s32 %s70, 1
      %s72 = scalar_select %p69, %s70, %s71
      %p75 = pneg %p69
      %p76 = scmp.eq.s32.totalorder %s34, 1
      %p77 = por %p75, %p76
      %p78 = scmp.ne.s32.totalorder %s70, %s73
      %p79 = scmp.eq.s32.totalorder %s34, 0
      %p80 = por %p78, %p79
      %p81 = scmp.ne.s32.totalorder %s70, %s73
      %p82 = scmp.eq.s32.totalorder %s39, 1
      %p83 = por %p81, %p82
      %p84 = scmp.ne.s32.totalorder %s73, %s74
      %p85 = scmp.eq.s32.totalorder %s39, 0
      %p86 = por %p84, %p85
      %p87 = scmp.ne.s32.totalorder %s73, %s74
      %p88 = scmp.eq.s32.totalorder %s40, 1
      %p89 = por %p87, %p88
      %p91 = scmp.ne.s32.totalorder %s74, %s90
      %p92 = scmp.eq.s32.totalorder %s40, 0
      %p93 = por %p91, %p92
      %s95 = sadd.s32 %s94, 1
      %p98 = scmp.eq.s32.totalorder %s34, 1
      %p99 = scmp.ne.s32.totalorder %s94, %s96
      %p100 = scmp.eq.s32.totalorder %s34, 0
      %p101 = por %p99, %p100
      %p102 = scmp.ne.s32.totalorder %s94, %s96
      %p103 = scmp.eq.s32.totalorder %s39, 1
      %p104 = por %p102, %p103
      %p105 = scmp.ne.s32.totalorder %s96, %s97
      %p106 = scmp.eq.s32.totalorder %s39, 0
      %p107 = por %p105, %p106
      %p108 = scmp.ne.s32.totalorder %s96, %s97
      %p109 = scmp.eq.s32.totalorder %s40, 1
      %p110 = por %p108, %p109
      %p112 = scmp.ne.s32.totalorder %s97, %s111
      %p113 = scmp.eq.s32.totalorder %s40, 0
      %p114 = por %p112, %p113
      %s116 = sadd.s32 %s115, 1
      %p119 = scmp.eq.s32.totalorder %s34, 1
      %p120 = scmp.ne.s32.totalorder %s115, %s117
      %p121 = scmp.eq.s32.totalorder %s34, 0
      %p122 = por %p120, %p121
      %p123 = scmp.ne.s32.totalorder %s115, %s117
      %p124 = scmp.eq.s32.totalorder %s39, 1
      %p125 = por %p123, %p124
      %p126 = scmp.ne.s32.totalorder %s117, %s118
      %p127 = scmp.eq.s32.totalorder %s39, 0
      %p128 = por %p126, %p127
      %p129 = scmp.ne.s32.totalorder %s117, %s118
      %p130 = scmp.eq.s32.totalorder %s40, 1
      %p131 = por %p129, %p130
      %p133 = scmp.ne.s32.totalorder %s118, %s132
      %p134 = scmp.eq.s32.totalorder %s40, 0
      %p135 = por %p133, %p134
      %s137 = sadd.s32 %s136, 1
      %p140 = scmp.eq.s32.totalorder %s34, 1
      %p141 = scmp.ne.s32.totalorder %s136, %s138
      %p142 = scmp.eq.s32.totalorder %s34, 0
      %p143 = por %p141, %p142
      %p144 = scmp.ne.s32.totalorder %s136, %s138
      %p145 = scmp.eq.s32.totalorder %s39, 1
      %p146 = por %p144, %p145
      %p147 = scmp.ne.s32.totalorder %s138, %s139
      %p148 = scmp.eq.s32.totalorder %s39, 0
      %p149 = por %p147, %p148
      %p150 = scmp.ne.s32.totalorder %s138, %s139
      %p151 = scmp.eq.s32.totalorder %s40, 1
      %p152 = por %p150, %p151
      %p154 = scmp.ne.s32.totalorder %s139, %s153
      %p155 = scmp.eq.s32.totalorder %s40, 0
      %p156 = por %p154, %p155
      %s158 = sadd.s32 %s157, 1
      %p161 = scmp.eq.s32.totalorder %s34, 1
      %p162 = scmp.ne.s32.totalorder %s157, %s159
      %p163 = scmp.eq.s32.totalorder %s34, 0
      %p164 = por %p162, %p163
      %p165 = scmp.ne.s32.totalorder %s157, %s159
      %p166 = scmp.eq.s32.totalorder %s39, 1
      %p167 = por %p165, %p166
      %p168 = scmp.ne.s32.totalorder %s159, %s160
      %p169 = scmp.eq.s32.totalorder %s39, 0
      %p170 = por %p168, %p169
      %p171 = scmp.ne.s32.totalorder %s159, %s160
      %p172 = scmp.eq.s32.totalorder %s40, 1
      %p173 = por %p171, %p172
      %p175 = scmp.ne.s32.totalorder %s160, %s174
      %p176 = scmp.eq.s32.totalorder %s40, 0
      %p177 = por %p175, %p176
      %s179 = sadd.s32 %s178, 1
      %p182 = scmp.eq.s32.totalorder %s34, 1
      %p183 = scmp.ne.s32.totalorder %s178, %s180
      %p184 = scmp.eq.s32.totalorder %s34, 0
      %p185 = por %p183, %p184
      %p186 = scmp.ne.s32.totalorder %s178, %s180
      %p187 = scmp.eq.s32.totalorder %s39, 1
      %p188 = por %p186, %p187
      %p189 = scmp.ne.s32.totalorder %s180, %s181
      %p190 = scmp.eq.s32.totalorder %s39, 0
      %p191 = por %p189, %p190
      %p192 = scmp.ne.s32.totalorder %s180, %s181
      %p193 = scmp.eq.s32.totalorder %s40, 1
      %p194 = por %p192, %p193
      %p196 = scmp.ne.s32.totalorder %s181, %s195
      %p197 = scmp.eq.s32.totalorder %s40, 0
      %p198 = por %p196, %p197
      %s200 = sadd.s32 %s199, 1
      %p203 = scmp.eq.s32.totalorder %s34, 1
      %p204 = scmp.ne.s32.totalorder %s199, %s201
      %p205 = scmp.eq.s32.totalorder %s34, 0
      %p206 = por %p204, %p205
      %p207 = scmp.ne.s32.totalorder %s199, %s201
      %p208 = scmp.eq.s32.totalorder %s39, 1
      %p209 = por %p207, %p208
      %p210 = scmp.ne.s32.totalorder %s201, %s202
      %p211 = scmp.eq.s32.totalorder %s39, 0
      %p212 = por %p210, %p211
      %p213 = scmp.ne.s32.totalorder %s201, %s202
      %p214 = scmp.eq.s32.totalorder %s40, 1
      %p215 = por %p213, %p214
      %p217 = scmp.ne.s32.totalorder %s202, %s216
      %p218 = scmp.eq.s32.totalorder %s40, 0
      %p219 = por %p217, %p218
      %s221 = sadd.s32 %s220, 1
      %p224 = scmp.eq.s32.totalorder %s34, 1
      %p225 = scmp.ne.s32.totalorder %s220, %s222
      %p226 = scmp.eq.s32.totalorder %s34, 0
      %p227 = por %p225, %p226
      %p228 = scmp.ne.s32.totalorder %s220, %s222
      %p229 = scmp.eq.s32.totalorder %s39, 1
      %p230 = por %p228, %p229
      %p231 = scmp.ne.s32.totalorder %s222, %s223
      %p232 = scmp.eq.s32.totalorder %s39, 0
      %p233 = por %p231, %p232
      %p234 = scmp.ne.s32.totalorder %s222, %s223
      %p235 = scmp.eq.s32.totalorder %s40, 1
      %p236 = por %p234, %p235
      %p238 = scmp.ne.s32.totalorder %s223, %s237
      %p239 = scmp.eq.s32.totalorder %s40, 0
      %p240 = por %p238, %p239
      %s242 = sadd.s32 %s241, 1
      %p245 = scmp.eq.s32.totalorder %s34, 1
      %p246 = scmp.ne.s32.totalorder %s241, %s243
      %p247 = scmp.eq.s32.totalorder %s34, 0
      %p248 = por %p246, %p247
      %p249 = scmp.ne.s32.totalorder %s241, %s243
      %p250 = scmp.eq.s32.totalorder %s39, 1
      %p251 = por %p249, %p250
      %p252 = scmp.ne.s32.totalorder %s243, %s244
      %p253 = scmp.eq.s32.totalorder %s39, 0
      %p254 = por %p252, %p253
      %p255 = scmp.ne.s32.totalorder %s243, %s244
      %p256 = scmp.eq.s32.totalorder %s40, 1
      %p257 = por %p255, %p256
      %p259 = scmp.ne.s32.totalorder %s244, %s258
      %p260 = scmp.eq.s32.totalorder %s40, 0
      %p261 = por %p259, %p260
      %s263 = sadd.s32 %s262, 1
      %p266 = scmp.eq.s32.totalorder %s34, 1
      %p267 = scmp.ne.s32.totalorder %s262, %s264
      %p268 = scmp.eq.s32.totalorder %s34, 0
      %p269 = por %p267, %p268
      %p270 = scmp.ne.s32.totalorder %s262, %s264
      %p271 = scmp.eq.s32.totalorder %s39, 1
      %p272 = por %p270, %p271
      %p273 = scmp.ne.s32.totalorder %s264, %s265
      %p274 = scmp.eq.s32.totalorder %s39, 0
      %p275 = por %p273, %p274
      %p276 = scmp.ne.s32.totalorder %s264, %s265
      %p277 = scmp.eq.s32.totalorder %s40, 1
      %p278 = por %p276, %p277
      %p280 = scmp.ne.s32.totalorder %s265, %s279
      %p281 = scmp.eq.s32.totalorder %s40, 0
      %p282 = por %p280, %p281
      %s284 = sadd.s32 %s283, 1
      %p287 = scmp.eq.s32.totalorder %s34, 1
      %p288 = scmp.ne.s32.totalorder %s283, %s285
      %p289 = scmp.eq.s32.totalorder %s34, 0
      %p290 = por %p288, %p289
      %p291 = scmp.ne.s32.totalorder %s283, %s285
      %p292 = scmp.eq.s32.totalorder %s39, 1
      %p293 = por %p291, %p292
      %p294 = scmp.ne.s32.totalorder %s285, %s286
      %p295 = scmp.eq.s32.totalorder %s39, 0
      %p296 = por %p294, %p295
      %p297 = scmp.ne.s32.totalorder %s285, %s286
      %p298 = scmp.eq.s32.totalorder %s40, 1
      %p299 = por %p297, %p298
      %p301 = scmp.ne.s32.totalorder %s286, %s300
      %p302 = scmp.eq.s32.totalorder %s40, 0
      %p303 = por %p301, %p302
      %s305 = sadd.s32 %s304, 1
      %p308 = scmp.eq.s32.totalorder %s34, 1
      %p309 = scmp.ne.s32.totalorder %s304, %s306
      %p310 = scmp.eq.s32.totalorder %s34, 0
      %p311 = por %p309, %p310
      %p312 = scmp.ne.s32.totalorder %s304, %s306
      %p313 = scmp.eq.s32.totalorder %s39, 1
      %p314 = por %p312, %p313
      %p315 = scmp.ne.s32.totalorder %s306, %s307
      %p316 = scmp.eq.s32.totalorder %s39, 0
      %p317 = por %p315, %p316
      %p318 = scmp.ne.s32.totalorder %s306, %s307
      %p319 = scmp.eq.s32.totalorder %s40, 1
      %p320 = por %p318, %p319
      %p322 = scmp.ne.s32.totalorder %s307, %s321
      %p323 = scmp.eq.s32.totalorder %s40, 0
      %p324 = por %p322, %p323
      %s326 = sadd.s32 %s325, 1
      %p329 = scmp.eq.s32.totalorder %s34, 1
      %p330 = scmp.ne.s32.totalorder %s325, %s327
      %p331 = scmp.eq.s32.totalorder %s34, 0
      %p332 = por %p330, %p331
      %p333 = scmp.ne.s32.totalorder %s325, %s327
      %p334 = scmp.eq.s32.totalorder %s39, 1
      %p335 = por %p333, %p334
      %p336 = scmp.ne.s32.totalorder %s327, %s328
      %p337 = scmp.eq.s32.totalorder %s39, 0
      %p338 = por %p336, %p337
      %p339 = scmp.ne.s32.totalorder %s327, %s328
      %p340 = scmp.eq.s32.totalorder %s40, 1
      %p341 = por %p339, %p340
      %p343 = scmp.ne.s32.totalorder %s328, %s342
      %p344 = scmp.eq.s32.totalorder %s40, 0
      %p345 = por %p343, %p344
      %s347 = sadd.s32 %s346, 1
      %p350 = scmp.eq.s32.totalorder %s34, 1
      %p351 = scmp.ne.s32.totalorder %s346, %s348
      %p352 = scmp.eq.s32.totalorder %s34, 0
      %p353 = por %p351, %p352
      %p354 = scmp.ne.s32.totalorder %s346, %s348
      %p355 = scmp.eq.s32.totalorder %s39, 1
      %p356 = por %p354, %p355
      %p357 = scmp.ne.s32.totalorder %s348, %s349
      %p358 = scmp.eq.s32.totalorder %s39, 0
      %p359 = por %p357, %p358
      %p360 = scmp.ne.s32.totalorder %s348, %s349
      %p361 = scmp.eq.s32.totalorder %s40, 1
      %p362 = por %p360, %p361
      %p364 = scmp.ne.s32.totalorder %s349, %s363
      %p365 = scmp.eq.s32.totalorder %s40, 0
      %p366 = por %p364, %p365
      %s368 = sadd.s32 %s367, 1
      %p371 = scmp.eq.s32.totalorder %s34, 1
      %p372 = scmp.ne.s32.totalorder %s367, %s369
      %p373 = scmp.eq.s32.totalorder %s34, 0
      %p374 = por %p372, %p373
      %p375 = scmp.ne.s32.totalorder %s367, %s369
      %p376 = scmp.eq.s32.totalorder %s39, 1
      %p377 = por %p375, %p376
      %p378 = scmp.ne.s32.totalorder %s369, %s370
      %p379 = scmp.eq.s32.totalorder %s39, 0
      %p380 = por %p378, %p379
      %p381 = scmp.ne.s32.totalorder %s369, %s370
      %p382 = scmp.eq.s32.totalorder %s40, 1
      %p383 = por %p381, %p382
      %p385 = scmp.ne.s32.totalorder %s370, %s384
      %p386 = scmp.eq.s32.totalorder %s40, 0
      %p387 = por %p385, %p386
      %s388 = ssub.s32 %s34, %s41
      %p389 = scmp.eq.s32.totalorder %s388, 0
      %s391 = sadd.s32 %s390, 1
      %s392 = scalar_select %p389, %s390, %s391
      %p395 = pneg %p389
      %p396 = scmp.eq.s32.totalorder %s34, 1
      %p397 = por %p395, %p396
      %p398 = scmp.ne.s32.totalorder %s390, %s393
      %p399 = scmp.eq.s32.totalorder %s34, 0
      %p400 = por %p398, %p399
      %p401 = scmp.ne.s32.totalorder %s390, %s393
      %p402 = scmp.eq.s32.totalorder %s39, 1
      %p403 = por %p401, %p402
      %p404 = scmp.ne.s32.totalorder %s393, %s394
      %p405 = scmp.eq.s32.totalorder %s39, 0
      %p406 = por %p404, %p405
      %p407 = scmp.ne.s32.totalorder %s393, %s394
      %p408 = scmp.eq.s32.totalorder %s40, 1
      %p409 = por %p407, %p408
      %p411 = scmp.ne.s32.totalorder %s394, %s410
      %p412 = scmp.eq.s32.totalorder %s40, 0
      %p413 = por %p411, %p412
      %p414 = scmp.le.s32.totalorder 1, %s34
      %p415 = scmp.lt.s32.totalorder %s34, 3
      %p416 = pnand %p414, %p415
      %p417 = pneg %p416
      // Predicated region
      $region9: #{tpu_custom_call.1} parent=5 // pred_check
        _
      $region10: #{tpu_custom_call.1} parent=5 // pred_check_branch
        %419 = sbr.rel (%p416) target = $region12
      $region11: #{tpu_custom_call.1} parent=5 // pred_region
        %s420 = ssub.s32 %s34, 1
        // Predicated region
        $region13: #{tpu_custom_call.1} parent=11 // pred_check
          %p421 = pneg %p107
        $region14: #{tpu_custom_call.1} parent=11 // pred_check_branch
          %423 = sbr.rel (%p421) target = $region16
        $region15: #{tpu_custom_call.1} parent=11 // pred_region
          %s425 = ssub.s32 3072, 3072
          %426 = vsyncadd [#allocation7], %s425
          %s427 = sshll.u32 [#allocation8], 4
          %s428 = int_to_ptr.vmem [resolvable:$true] %s427
          %433 = dma.hbm_to_vmem [thread:$0]  %s2, 3072, %s428, [#allocation7], 64, 64, 4
        $region16: #{tpu_custom_call.1} parent=11 // pred_fallthru
          _
        // Predicated region
        $region17: #{tpu_custom_call.1} parent=11 // pred_check
          %p434 = pneg %p128
        $region18: #{tpu_custom_call.1} parent=11 // pred_check_branch
          %436 = sbr.rel (%p434) target = $region20
        $region19: #{tpu_custom_call.1} parent=11 // pred_region
          _
        $region20: #{tpu_custom_call.1} parent=11 // pred_fallthru
          _
        // Predicated region
        $region21: #{tpu_custom_call.1} parent=11 // pred_check
          %p437 = pneg %p149
        $region22: #{tpu_custom_call.1} parent=11 // pred_check_branch
          %439 = sbr.rel (%p437) target = $region24
        $region23: #{tpu_custom_call.1} parent=11 // pred_region
          %s441 = ssub.s32 3072, 3072
          %442 = vsyncadd [#allocation10], %s441
          %s443 = sshll.u32 [#allocation9], 4
          %s444 = int_to_ptr.vmem [resolvable:$true] %s443
          %449 = dma.hbm_to_vmem [thread:$0]  %s4, 3072, %s444, [#allocation10], 64, 64, 4
        $region24: #{tpu_custom_call.1} parent=11 // pred_fallthru
          _
        // Predicated region
        $region25: #{tpu_custom_call.1} parent=11 // pred_check
          %p450 = pneg %p170
        $region26: #{tpu_custom_call.1} parent=11 // pred_check_branch
          %452 = sbr.rel (%p450) target = $region28
        $region27: #{tpu_custom_call.1} parent=11 // pred_region
          _
        $region28: #{tpu_custom_call.1} parent=11 // pred_fallthru
          _
        // Predicated region
        $region29: #{tpu_custom_call.1} parent=11 // pred_check
          %p453 = pneg %p191
        $region30: #{tpu_custom_call.1} parent=11 // pred_check_branch
          %455 = sbr.rel (%p453) target = $region32
        $region31: #{tpu_custom_call.1} parent=11 // pred_region
          %s457 = ssub.s32 3072, 3072
          %458 = vsyncadd [#allocation10], %s457
          %s459 = sshll.u32 [#allocation11], 4
          %s460 = int_to_ptr.vmem [resolvable:$true] %s459
          %465 = dma.hbm_to_vmem [thread:$0]  %s6, 3072, %s460, [#allocation10], 64, 64, 4
        $region32: #{tpu_custom_call.1} parent=11 // pred_fallthru
          _
        // Predicated region
        $region33: #{tpu_custom_call.1} parent=11 // pred_check
          %p466 = pneg %p212
        $region34: #{tpu_custom_call.1} parent=11 // pred_check_branch
          %468 = sbr.rel (%p466) target = $region36
        $region35: #{tpu_custom_call.1} parent=11 // pred_region
          _
        $region36: #{tpu_custom_call.1} parent=11 // pred_fallthru
          _
        // Predicated region
        $region37: #{tpu_custom_call.1} parent=11 // pred_check
          %p469 = pneg %p233
        $region38: #{tpu_custom_call.1} parent=11 // pred_check_branch
          %471 = sbr.rel (%p469) target = $region40
        $region39: #{tpu_custom_call.1} parent=11 // pred_region
          %s473 = ssub.s32 3072, 3072
          %474 = vsyncadd [#allocation13], %s473
          %s475 = sshll.u32 [#allocation12], 4
          %s476 = int_to_ptr.vmem [resolvable:$true] %s475
          %481 = dma.hbm_to_vmem [thread:$0]  %s8, 3072, %s476, [#allocation13], 64, 64, 4
        $region40: #{tpu_custom_call.1} parent=11 // pred_fallthru
          _
        // Predicated region
        $region41: #{tpu_custom_call.1} parent=11 // pred_check
          %p482 = pneg %p254
        $region42: #{tpu_custom_call.1} parent=11 // pred_check_branch
          %484 = sbr.rel (%p482) target = $region44
        $region43: #{tpu_custom_call.1} parent=11 // pred_region
          _
        $region44: #{tpu_custom_call.1} parent=11 // pred_fallthru
          _
        // Predicated region
        $region45: #{tpu_custom_call.1} parent=11 // pred_check
          %p485 = pneg %p275
        $region46: #{tpu_custom_call.1} parent=11 // pred_check_branch
          %487 = sbr.rel (%p485) target = $region48
        $region47: #{tpu_custom_call.1} parent=11 // pred_region
          %s489 = ssub.s32 3072, 3072
          %490 = vsyncadd [#allocation13], %s489
          %s491 = sshll.u32 [#allocation14], 4
          %s492 = int_to_ptr.vmem [resolvable:$true] %s491
          %497 = dma.hbm_to_vmem [thread:$0]  %s10, 3072, %s492, [#allocation13], 64, 64, 4
        $region48: #{tpu_custom_call.1} parent=11 // pred_fallthru
          _
        // Predicated region
        $region49: #{tpu_custom_call.1} parent=11 // pred_check
          %p498 = pneg %p296
        $region50: #{tpu_custom_call.1} parent=11 // pred_check_branch
          %500 = sbr.rel (%p498) target = $region52
        $region51: #{tpu_custom_call.1} parent=11 // pred_region
          _
        $region52: #{tpu_custom_call.1} parent=11 // pred_fallthru
          _
        // Predicated region
        $region53: #{tpu_custom_call.1} parent=11 // pred_check
          %p501 = pneg %p317
        $region54: #{tpu_custom_call.1} parent=11 // pred_check_branch
          %503 = sbr.rel (%p501) target = $region56
        $region55: #{tpu_custom_call.1} parent=11 // pred_region
          %s505 = ssub.s32 3072, 3072
          %506 = vsyncadd [#allocation16], %s505
          %s507 = sshll.u32 [#allocation15], 4
          %s508 = int_to_ptr.vmem [resolvable:$true] %s507
          %513 = dma.hbm_to_vmem [thread:$0]  %s12, 3072, %s508, [#allocation16], 64, 64, 4
        $region56: #{tpu_custom_call.1} parent=11 // pred_fallthru
          _
        // Predicated region
        $region57: #{tpu_custom_call.1} parent=11 // pred_check
          %p514 = pneg %p338
        $region58: #{tpu_custom_call.1} parent=11 // pred_check_branch
          %516 = sbr.rel (%p514) target = $region60
        $region59: #{tpu_custom_call.1} parent=11 // pred_region
          _
        $region60: #{tpu_custom_call.1} parent=11 // pred_fallthru
          _
        // Predicated region
        $region61: #{tpu_custom_call.1} parent=11 // pred_check
          %p517 = pneg %p359
        $region62: #{tpu_custom_call.1} parent=11 // pred_check_branch
          %519 = sbr.rel (%p517) target = $region64
        $region63: #{tpu_custom_call.1} parent=11 // pred_region
          _
        $region64: #{tpu_custom_call.1} parent=11 // pred_fallthru
          _
        // Predicated region
        $region65: #{tpu_custom_call.1} parent=11 // pred_check
          %p520 = pneg %p380
        $region66: #{tpu_custom_call.1} parent=11 // pred_check_branch
          %522 = sbr.rel (%p520) target = $region68
        $region67: #{tpu_custom_call.1} parent=11 // pred_region
          %s524 = ssub.s32 2048, 2048
          %525 = vsyncadd [#allocation16], %s524
          %s526 = sshll.u32 [#allocation17], 4
          %s527 = int_to_ptr.vmem [resolvable:$true] %s526
          %532 = dma.hbm_to_vmem [thread:$0]  %s15, 2048, %s527, [#allocation16], 128, 128, 8
        $region68: #{tpu_custom_call.1} parent=11 // pred_fallthru
          _
      $region12: #{tpu_custom_call.1} parent=5 // pred_fallthru
        _
      %p533 = scmp.lt.s32.totalorder %s34, 2
      // Predicated region
      $region69: #{tpu_custom_call.1} parent=5 // pred_check
        %p534 = pneg %p533
      $region70: #{tpu_custom_call.1} parent=5 // pred_check_branch
        %536 = sbr.rel (%p534) target = $region72
      $region71: #{tpu_custom_call.1} parent=5 // pred_region
        // Predicated region
        $region73: #{tpu_custom_call.1} parent=71 // pred_check
          %p537 = pneg %p54
        $region74: #{tpu_custom_call.1} parent=71 // pred_check_branch
          %539 = sbr.rel (%p537) target = $region76
        $region75: #{tpu_custom_call.1} parent=71 // pred_region
          %s540 = sand.u32 %s44, 1
          %s541 = scalar_lea.sflag [#allocation4], %s540
          %s542 = sand.u32 %s44, 1
          %s543 = smul.addr %s542, 16
          %s544 = scalar_lea.vmem [#allocation3], %s543
          %s546 = ssub.s32 256, 256
          %547 = vsyncadd %s541, %s546
          %s548 = smul.addr %s34, 2
          %s549 = smul.addr %s548, 128
          %s550 = scalar_lea.hbm %s0, %s549
          %s551 = sshll.u32 %s544, 4
          %s552 = int_to_ptr.vmem [resolvable:$true] %s551
          %557 = dma.hbm_to_vmem [thread:$0]  %s550, 256, %s552, %s541, 128, 128, 8
        $region76: #{tpu_custom_call.1} parent=71 // pred_fallthru
          _
        // Predicated region
        $region77: #{tpu_custom_call.1} parent=71 // pred_check
          %p558 = pneg %p80
        $region78: #{tpu_custom_call.1} parent=71 // pred_check_branch
          %560 = sbr.rel (%p558) target = $region80
        $region79: #{tpu_custom_call.1} parent=71 // pred_region
          %s561 = sand.u32 %s34, 1
          %s562 = scalar_lea.sflag [#allocation7], %s561
          %s563 = sand.u32 %s70, 1
          %s564 = smul.addr %s563, 16
          %s565 = scalar_lea.vmem [#allocation6], %s564
          %s567 = ssub.s32 256, 256
          %568 = vsyncadd %s562, %s567
          %s569 = smul.addr %s34, 2
          %s570 = smul.addr %s569, 128
          %s571 = scalar_lea.hbm %s1, %s570
          %s572 = sshll.u32 %s565, 4
          %s573 = int_to_ptr.vmem [resolvable:$true] %s572
          %578 = dma.hbm_to_vmem [thread:$0]  %s571, 256, %s573, %s562, 128, 128, 8
        $region80: #{tpu_custom_call.1} parent=71 // pred_fallthru
          _
      $region72: #{tpu_custom_call.1} parent=5 // pred_fallthru
        _
      %p579 = scmp.le.s32.totalorder 1, %s34
      %p580 = scmp.lt.s32.totalorder %s34, 3
      %p581 = pnand %p579, %p580
      %p582 = pneg %p581
      // Predicated region
      $region81: #{tpu_custom_call.1} parent=5 // pred_check
        _
      $region82: #{tpu_custom_call.1} parent=5 // pred_check_branch
        %584 = sbr.rel (%p581) target = $region84
      $region83: #{tpu_custom_call.1} parent=5 // pred_region
        %s585 = ssub.s32 %s34, 1
        %s586 = sand.u32 %s47, 1
        %s587 = scalar_lea.sflag [#allocation4], %s586
        %s588 = sand.u32 %s47, 1
        %s589 = smul.addr %s588, 16
        %s590 = scalar_lea.vmem [#allocation3], %s589
        // Predicated region
        $region85: #{tpu_custom_call.1} parent=83 // pred_check
          %p591 = pneg %p60
        $region86: #{tpu_custom_call.1} parent=83 // pred_check_branch
          %593 = sbr.rel (%p591) target = $region88
        $region87: #{tpu_custom_call.1} parent=83 // pred_region
          %594 = dma.done %s587, 256
        $region88: #{tpu_custom_call.1} parent=83 // pred_fallthru
          _
        %s595 = sand.u32 %s39, 1
        %s596 = scalar_lea.sflag [#allocation7], %s595
        %s597 = sand.u32 %s73, 1
        %s598 = smul.addr %s597, 16
        %s599 = scalar_lea.vmem [#allocation6], %s598
        // Predicated region
        $region89: #{tpu_custom_call.1} parent=83 // pred_check
          %p600 = pneg %p86
        $region90: #{tpu_custom_call.1} parent=83 // pred_check_branch
          %602 = sbr.rel (%p600) target = $region92
        $region91: #{tpu_custom_call.1} parent=83 // pred_region
          %603 = dma.done %s596, 256
        $region92: #{tpu_custom_call.1} parent=83 // pred_fallthru
          _
        // Predicated region
        $region93: #{tpu_custom_call.1} parent=83 // pred_check
          %p604 = pneg %p107
        $region94: #{tpu_custom_call.1} parent=83 // pred_check_branch
          %606 = sbr.rel (%p604) target = $region96
        $region95: #{tpu_custom_call.1} parent=83 // pred_region
          %607 = dma.done [#allocation7], 3072
        $region96: #{tpu_custom_call.1} parent=83 // pred_fallthru
          _
        // Predicated region
        $region97: #{tpu_custom_call.1} parent=83 // pred_check
          %p608 = pneg %p149
        $region98: #{tpu_custom_call.1} parent=83 // pred_check_branch
          %610 = sbr.rel (%p608) target = $region100
        $region99: #{tpu_custom_call.1} parent=83 // pred_region
          %611 = dma.done [#allocation10], 3072
        $region100: #{tpu_custom_call.1} parent=83 // pred_fallthru
          _
        // Predicated region
        $region101: #{tpu_custom_call.1} parent=83 // pred_check
          %p612 = pneg %p191
        $region102: #{tpu_custom_call.1} parent=83 // pred_check_branch
          %614 = sbr.rel (%p612) target = $region104
        $region103: #{tpu_custom_call.1} parent=83 // pred_region
          %615 = dma.done [#allocation10], 3072
        $region104: #{tpu_custom_call.1} parent=83 // pred_fallthru
          _
        // Predicated region
        $region105: #{tpu_custom_call.1} parent=83 // pred_check
          %p616 = pneg %p233
        $region106: #{tpu_custom_call.1} parent=83 // pred_check_branch
          %618 = sbr.rel (%p616) target = $region108
        $region107: #{tpu_custom_call.1} parent=83 // pred_region
          %619 = dma.done [#allocation13], 3072
        $region108: #{tpu_custom_call.1} parent=83 // pred_fallthru
          _
        // Predicated region
        $region109: #{tpu_custom_call.1} parent=83 // pred_check
          %p620 = pneg %p275
        $region110: #{tpu_custom_call.1} parent=83 // pred_check_branch
          %622 = sbr.rel (%p620) target = $region112
        $region111: #{tpu_custom_call.1} parent=83 // pred_region
          %623 = dma.done [#allocation13], 3072
        $region112: #{tpu_custom_call.1} parent=83 // pred_fallthru
          _
        // Predicated region
        $region113: #{tpu_custom_call.1} parent=83 // pred_check
          %p624 = pneg %p317
        $region114: #{tpu_custom_call.1} parent=83 // pred_check_branch
          %626 = sbr.rel (%p624) target = $region116
        $region115: #{tpu_custom_call.1} parent=83 // pred_region
          %627 = dma.done [#allocation16], 3072
        $region116: #{tpu_custom_call.1} parent=83 // pred_fallthru
          _
        // Predicated region
        $region117: #{tpu_custom_call.1} parent=83 // pred_check
          %p628 = pneg %p380
        $region118: #{tpu_custom_call.1} parent=83 // pred_check_branch
          %630 = sbr.rel (%p628) target = $region120
        $region119: #{tpu_custom_call.1} parent=83 // pred_region
          %631 = dma.done [#allocation16], 2048
        $region120: #{tpu_custom_call.1} parent=83 // pred_fallthru
          _
        %s632 = sand.u32 %s47, 1
        %s633 = scalar_lea.sflag [#allocation4], %s632
        %s634 = sand.u32 %s47, 1
        %s635 = smul.addr %s634, 16
        %s636 = scalar_lea.vmem [#allocation3], %s635
        %p637 = pneg %p60
        %p638 = pneg %p57
        %s639 = sand.u32 %s39, 1
        %s640 = scalar_lea.sflag [#allocation7], %s639
        %s641 = sand.u32 %s73, 1
        %s642 = smul.addr %s641, 16
        %s643 = scalar_lea.vmem [#allocation6], %s642
        %p644 = pneg %p86
        %p645 = pneg %p83
        %p646 = pneg %p107
        %p647 = pneg %p104
        %p648 = pneg %p128
        %p649 = pneg %p125
        %p650 = pneg %p149
        %p651 = pneg %p146
        %p652 = pneg %p170
        %p653 = pneg %p167
        %p654 = pneg %p191
        %p655 = pneg %p188
        %p656 = pneg %p212
        %p657 = pneg %p209
        %p658 = pneg %p233
        %p659 = pneg %p230
        %p660 = pneg %p254
        %p661 = pneg %p251
        %p662 = pneg %p275
        %p663 = pneg %p272
        %p664 = pneg %p296
        %p665 = pneg %p293
        %p666 = pneg %p317
        %p667 = pneg %p314
        %p668 = pneg %p338
        %p669 = pneg %p335
        %p670 = pneg %p359
        %p671 = pneg %p356
        %p672 = pneg %p380
        %p673 = pneg %p377
        %p674 = pneg %p406
        %p675 = pneg %p403
        %s676 = sand.u32 %s393, 1
        %s677 = scalar_lea.sflag [#allocation5], %s676
        %s678 = sand.u32 %s393, 1
        %s679 = smul.addr %s678, 64
        %s680 = scalar_lea.vmem [#allocation18], %s679
        %682 = vst [vmem:[#allocation2] sm:$0xff] 0.0
        %683 = vst [vmem:[#allocation2 + $0x18] sm:$0xff] 0.0
        %v684 = vld [vmem:[%s590] sm:$0xff]
        %v685 = vld [vmem:[%s590 + $0x8] sm:$0xff]
        %v686 = vmax.f32 %v684, 0.0
        %v687 = vmax.f32 %v685, 0.0
        %688 = vst [vmem:[#allocation2 + $0x8] sm:$0xff] %v686
        %689 = vst [vmem:[#allocation2 + $0x10] sm:$0xff] %v687
        %v690 = vld [vmem:[#allocation2 + $0x7] sm:$0xff]
        %v691 = vld [vmem:[#allocation2 + $0xf] sm:$0xff]
        %v692 = vld [vmem:[#allocation2 + $0x9] sm:$0xff]
        %v693 = vld [vmem:[#allocation2 + $0x11] sm:$0xff]
        %v694 = vpack.c.bf16 %v691, %v690
        %v695 = vpack.c.bf16 %v687, %v686
        %v696 = vpack.c.bf16 %v693, %v692
        %v697 = vld [vmem:[%s3] sm:$0x1]
        %v698 = vld [vmem:[#allocation8] sm:$0xf]
        %v699 = vld [vmem:[#allocation8 + $0x4] sm:$0xf]
        %v700 = vld [vmem:[#allocation8 + $0x8] sm:$0xf]
        %v701 = vld [vmem:[#allocation8 + $0xc] sm:$0xf]
        %v702 = vld [vmem:[#allocation8 + $0x10] sm:$0xf]
        %v703 = vld [vmem:[#allocation8 + $0x14] sm:$0xf]
        %v704 = vld [vmem:[#allocation8 + $0x18] sm:$0xf]
        %v705 = vld [vmem:[#allocation8 + $0x1c] sm:$0xf]
        %v706 = vld [vmem:[#allocation8 + $0x20] sm:$0xf]
        %v707 = vld [vmem:[#allocation8 + $0x24] sm:$0xf]
        %v708 = vld [vmem:[#allocation8 + $0x28] sm:$0xf]
        %v709 = vld [vmem:[#allocation8 + $0x2c] sm:$0xf]
        %v710 = vld [vmem:[#allocation8 + $0x30] sm:$0xf]
        %v711 = vld [vmem:[#allocation8 + $0x34] sm:$0xf]
        %v712 = vld [vmem:[#allocation8 + $0x38] sm:$0xf]
        %v713 = vld [vmem:[#allocation8 + $0x3c] sm:$0xf]
        %v714 = vld [vmem:[#allocation8 + $0x40] sm:$0xf]
        %v715 = vld [vmem:[#allocation8 + $0x44] sm:$0xf]
        %v716 = vld [vmem:[#allocation8 + $0x48] sm:$0xf]
        %v717 = vld [vmem:[#allocation8 + $0x4c] sm:$0xf]
        %v718 = vld [vmem:[#allocation8 + $0x50] sm:$0xf]
        %v719 = vld [vmem:[#allocation8 + $0x54] sm:$0xf]
        %v720 = vld [vmem:[#allocation8 + $0x58] sm:$0xf]
        %v721 = vld [vmem:[#allocation8 + $0x5c] sm:$0xf]
        %v722 = vld [vmem:[#allocation8 + $0x60] sm:$0xf]
        %v723 = vld [vmem:[#allocation8 + $0x64] sm:$0xf]
        %v724 = vld [vmem:[#allocation8 + $0x68] sm:$0xf]
        %v725 = vld [vmem:[#allocation8 + $0x6c] sm:$0xf]
        %v726 = vld [vmem:[#allocation8 + $0x70] sm:$0xf]
        %v727 = vld [vmem:[#allocation8 + $0x74] sm:$0xf]
        %v728 = vld [vmem:[#allocation8 + $0x78] sm:$0xf]
        %v729 = vld [vmem:[#allocation8 + $0x7c] sm:$0xf]
        %v730 = vld [vmem:[#allocation8 + $0x80] sm:$0xf]
        %v731 = vld [vmem:[#allocation8 + $0x84] sm:$0xf]
        %v732 = vld [vmem:[#allocation8 + $0x88] sm:$0xf]
        %v733 = vld [vmem:[#allocation8 + $0x8c] sm:$0xf]
        %v734 = vld [vmem:[#allocation8 + $0x90] sm:$0xf]
        %v735 = vld [vmem:[#allocation8 + $0x94] sm:$0xf]
        %v736 = vld [vmem:[#allocation8 + $0x98] sm:$0xf]
        %v737 = vld [vmem:[#allocation8 + $0x9c] sm:$0xf]
        %v738 = vld [vmem:[#allocation8 + $0xa0] sm:$0xf]
        %v739 = vld [vmem:[#allocation8 + $0xa4] sm:$0xf]
        %v740 = vld [vmem:[#allocation8 + $0xa8] sm:$0xf]
        %v741 = vld [vmem:[#allocation8 + $0xac] sm:$0xf]
        %v742 = vld [vmem:[#allocation8 + $0xb0] sm:$0xf]
        %v743 = vld [vmem:[#allocation8 + $0xb4] sm:$0xf]
        %v744 = vld [vmem:[#allocation8 + $0xb8] sm:$0xf]
        %v745 = vld [vmem:[#allocation8 + $0xbc] sm:$0xf]
        %v794 = vunpack.c.l.b16 %v698
        %v795 = vunpack.c.l.b16 %v699
        %v796 = vunpack.c.l.b16 %v700
        %v797 = vunpack.c.l.b16 %v701
        %v798 = vunpack.c.l.b16 %v702
        %v799 = vunpack.c.l.b16 %v703
        %v800 = vunpack.c.l.b16 %v704
        %v801 = vunpack.c.l.b16 %v705
        %v802 = vunpack.c.l.b16 %v706
        %v803 = vunpack.c.l.b16 %v707
        %v804 = vunpack.c.l.b16 %v708
        %v805 = vunpack.c.l.b16 %v709
        %v806 = vunpack.c.l.b16 %v710
        %v807 = vunpack.c.l.b16 %v711
        %v808 = vunpack.c.l.b16 %v712
        %v809 = vunpack.c.l.b16 %v713
        %v810 = vunpack.c.l.b16 %v714
        %v811 = vunpack.c.l.b16 %v715
        %v812 = vunpack.c.l.b16 %v716
        %v813 = vunpack.c.l.b16 %v717
        %v814 = vunpack.c.l.b16 %v718
        %v815 = vunpack.c.l.b16 %v719
        %v816 = vunpack.c.l.b16 %v720
        %v817 = vunpack.c.l.b16 %v721
        %v818 = vunpack.c.l.b16 %v722
        %v819 = vunpack.c.l.b16 %v723
        %v820 = vunpack.c.l.b16 %v724
        %v821 = vunpack.c.l.b16 %v725
        %v822 = vunpack.c.l.b16 %v726
        %v823 = vunpack.c.l.b16 %v727
        %v824 = vunpack.c.l.b16 %v728
        %v825 = vunpack.c.l.b16 %v729
        %v826 = vunpack.c.l.b16 %v730
        %v827 = vunpack.c.l.b16 %v731
        %v828 = vunpack.c.l.b16 %v732
        %v829 = vunpack.c.l.b16 %v733
        %v830 = vunpack.c.l.b16 %v734
        %v831 = vunpack.c.l.b16 %v735
        %v832 = vunpack.c.l.b16 %v736
        %v833 = vunpack.c.l.b16 %v737
        %v834 = vunpack.c.l.b16 %v738
        %v835 = vunpack.c.l.b16 %v739
        %v836 = vunpack.c.l.b16 %v740
        %v837 = vunpack.c.l.b16 %v741
        %v838 = vunpack.c.l.b16 %v742
        %v839 = vunpack.c.l.b16 %v743
        %v840 = vunpack.c.l.b16 %v744
        %v841 = vunpack.c.l.b16 %v745
        %v842 = vpack.c.b16 %v795, %v794
        %v843 = vpack.c.b16 %v797, %v796
        %v844 = vpack.c.b16 %v799, %v798
        %v845 = vpack.c.b16 %v801, %v800
        %v846 = vpack.c.b16 %v803, %v802
        %v847 = vpack.c.b16 %v805, %v804
        %v848 = vpack.c.b16 %v807, %v806
        %v849 = vpack.c.b16 %v809, %v808
        %v850 = vpack.c.b16 %v811, %v810
        %v851 = vpack.c.b16 %v813, %v812
        %v852 = vpack.c.b16 %v815, %v814
        %v853 = vpack.c.b16 %v817, %v816
        %v854 = vpack.c.b16 %v819, %v818
        %v855 = vpack.c.b16 %v821, %v820
        %v856 = vpack.c.b16 %v823, %v822
        %v857 = vpack.c.b16 %v825, %v824
        %v858 = vpack.c.b16 %v827, %v826
        %v859 = vpack.c.b16 %v829, %v828
        %v860 = vpack.c.b16 %v831, %v830
        %v861 = vpack.c.b16 %v833, %v832
        %v862 = vpack.c.b16 %v835, %v834
        %v863 = vpack.c.b16 %v837, %v836
        %v864 = vpack.c.b16 %v839, %v838
        %v865 = vpack.c.b16 %v841, %v840
        %890 = vmatprep.subr.bf16.mxu0 0
        %891 = vmatpush1.bf16.msra.mxu0 %v849
        %892 = vmatprep.subr.bf16.mxu0 0
        %893 = vmatpush1.bf16.msra.mxu0 %v848
        %894 = vmatprep.subr.bf16.mxu0 0
        %895 = vmatpush1.bf16.msra.mxu0 %v847
        %896 = vmatprep.subr.bf16.mxu0 0
        %897 = vmatpush1.bf16.msra.mxu0 %v846
        %898 = vmatprep.subr.bf16.mxu0 0
        %899 = vmatpush1.bf16.msra.mxu0 %v845
        %900 = vmatprep.subr.bf16.mxu0 0
        %901 = vmatpush1.bf16.msra.mxu0 %v844
        %902 = vmatprep.subr.bf16.mxu0 0
        %903 = vmatpush1.bf16.msra.mxu0 %v843
        %904 = vmatprep.subr.bf16.mxu0 0
        %905 = vmatpush1.bf16.msra.mxu0 %v842
        %906 = vmatprep.subr.bf16.mxu0 0
        %907 = vmatpush2.bf16.msra.mxu0 %v857
        %908 = vmatprep.subr.bf16.mxu0 0
        %909 = vmatpush2.bf16.msra.mxu0 %v856
        %910 = vmatprep.subr.bf16.mxu0 0
        %911 = vmatpush2.bf16.msra.mxu0 %v855
        %912 = vmatprep.subr.bf16.mxu0 0
        %913 = vmatpush2.bf16.msra.mxu0 %v854
        %914 = vmatprep.subr.bf16.mxu0 0
        %915 = vmatpush2.bf16.msra.mxu0 %v853
        %916 = vmatprep.subr.bf16.mxu0 0
        %917 = vmatpush2.bf16.msra.mxu0 %v852
        %918 = vmatprep.subr.bf16.mxu0 0
        %919 = vmatpush2.bf16.msra.mxu0 %v851
        %920 = vmatprep.subr.bf16.mxu0 0
        %921 = vmatpush2.bf16.msra.mxu0 %v850
        %922 = vmatprep.mubr.bf16.mxu0 %v695
        %923 = vmatmul.mubr.bf16.gmra.mxu0 %v694
        %v924 = vpop.f32.mrf.mxu0
        %v925 = vadd.f32 0.0, %v924
        %v926 = vpop.f32.mrf.mxu0
        %v927 = vpop.f32.mrf.mxu0
        %v928 = vadd.f32 0.0, %v927
        %v929 = vpop.f32.mrf.mxu0
        %930 = vdwg.mxu0
        %931 = vmatprep.subr.bf16.mxu0 0
        %932 = vmatpush1.bf16.msra.mxu0 %v865
        %933 = vmatprep.subr.bf16.mxu0 0
        %934 = vmatpush1.bf16.msra.mxu0 %v864
        %935 = vmatprep.subr.bf16.mxu0 0
        %936 = vmatpush1.bf16.msra.mxu0 %v863
        %937 = vmatprep.subr.bf16.mxu0 0
        %938 = vmatpush1.bf16.msra.mxu0 %v862
        %939 = vmatprep.subr.bf16.mxu0 0
        %940 = vmatpush1.bf16.msra.mxu0 %v861
        %941 = vmatprep.subr.bf16.mxu0 0
        %942 = vmatpush1.bf16.msra.mxu0 %v860
        %943 = vmatprep.subr.bf16.mxu0 0
        %944 = vmatpush1.bf16.msra.mxu0 %v859
        %945 = vmatprep.subr.bf16.mxu0 0
        %946 = vmatpush1.bf16.msra.mxu0 %v858
        %947 = vmatprep.subr.bf16.mxu0 0
        %948 = vmatpush2.bf16.msra.mxu0 0
        %949 = vmatprep.subr.bf16.mxu0 0
        %950 = vmatpush2.bf16.msra.mxu0 0
        %951 = vmatprep.subr.bf16.mxu0 0
        %952 = vmatpush2.bf16.msra.mxu0 0
        %953 = vmatprep.subr.bf16.mxu0 0
        %954 = vmatpush2.bf16.msra.mxu0 0
        %955 = vmatprep.subr.bf16.mxu0 0
        %956 = vmatpush2.bf16.msra.mxu0 0
        %957 = vmatprep.subr.bf16.mxu0 0
        %958 = vmatpush2.bf16.msra.mxu0 0
        %959 = vmatprep.subr.bf16.mxu0 0
        %960 = vmatpush2.bf16.msra.mxu0 0
        %961 = vmatprep.subr.bf16.mxu0 0
        %962 = vmatpush2.bf16.msra.mxu0 0
        %963 = vmatprep.mubr.bf16.mxu0 0
        %964 = vmatmul.mubr.bf16.gmra.mxu0 %v696
        %v965 = vpop.f32.mrf.mxu0
        %v966 = vadd.f32 %v925, %v965
        %v967 = vpop.f32.mrf.mxu0
        %v968 = vpop.f32.mrf.mxu0
        %v969 = vadd.f32 %v928, %v968
        %v970 = vpop.f32.mrf.mxu0
        %971 = vdwg.mxu0
        %v973 = vlaneseq
        %v974 = vshrl.u32 %v973, 7
        %v975 = vsub.s32 0, %v974
        %v976 = vrot.slane %v697, %v975
        %v978 = vadd.f32 %v976, %v966
        %v979 = vadd.f32 %v976, %v969
        %v980 = vmax.f32 %v978, 0.0
        %v981 = vmax.f32 %v979, 0.0
        %982 = vst [vmem:[#allocation2 + $0x8] sm:$0xff] %v980
        %983 = vst [vmem:[#allocation2 + $0x10] sm:$0xff] %v981
        %v984 = vld [vmem:[#allocation2 + $0x7] sm:$0xff]
        %v985 = vld [vmem:[#allocation2 + $0xf] sm:$0xff]
        %v986 = vld [vmem:[#allocation2 + $0x9] sm:$0xff]
        %v987 = vld [vmem:[#allocation2 + $0x11] sm:$0xff]
        %v988 = vpack.c.bf16 %v985, %v984
        %v989 = vpack.c.bf16 %v981, %v980
        %v990 = vpack.c.bf16 %v987, %v986
        %v991 = vld [vmem:[%s5] sm:$0x1]
        %v992 = vld [vmem:[#allocation9] sm:$0xf]
        %v993 = vld [vmem:[#allocation9 + $0x4] sm:$0xf]
        %v994 = vld [vmem:[#allocation9 + $0x8] sm:$0xf]
        %v995 = vld [vmem:[#allocation9 + $0xc] sm:$0xf]
        %v996 = vld [vmem:[#allocation9 + $0x10] sm:$0xf]
        %v997 = vld [vmem:[#allocation9 + $0x14] sm:$0xf]
        %v998 = vld [vmem:[#allocation9 + $0x18] sm:$0xf]
        %v999 = vld [vmem:[#allocation9 + $0x1c] sm:$0xf]
        %v1000 = vld [vmem:[#allocation9 + $0x20] sm:$0xf]
        %v1001 = vld [vmem:[#allocation9 + $0x24] sm:$0xf]
        %v1002 = vld [vmem:[#allocation9 + $0x28] sm:$0xf]
        %v1003 = vld [vmem:[#allocation9 + $0x2c] sm:$0xf]
        %v1004 = vld [vmem:[#allocation9 + $0x30] sm:$0xf]
        %v1005 = vld [vmem:[#allocation9 + $0x34] sm:$0xf]
        %v1006 = vld [vmem:[#allocation9 + $0x38] sm:$0xf]
        %v1007 = vld [vmem:[#allocation9 + $0x3c] sm:$0xf]
        %v1008 = vld [vmem:[#allocation9 + $0x40] sm:$0xf]
        %v1009 = vld [vmem:[#allocation9 + $0x44] sm:$0xf]
        %v1010 = vld [vmem:[#allocation9 + $0x48] sm:$0xf]
        %v1011 = vld [vmem:[#allocation9 + $0x4c] sm:$0xf]
        %v1012 = vld [vmem:[#allocation9 + $0x50] sm:$0xf]
        %v1013 = vld [vmem:[#allocation9 + $0x54] sm:$0xf]
        %v1014 = vld [vmem:[#allocation9 + $0x58] sm:$0xf]
        %v1015 = vld [vmem:[#allocation9 + $0x5c] sm:$0xf]
        %v1016 = vld [vmem:[#allocation9 + $0x60] sm:$0xf]
        %v1017 = vld [vmem:[#allocation9 + $0x64] sm:$0xf]
        %v1018 = vld [vmem:[#allocation9 + $0x68] sm:$0xf]
        %v1019 = vld [vmem:[#allocation9 + $0x6c] sm:$0xf]
        %v1020 = vld [vmem:[#allocation9 + $0x70] sm:$0xf]
        %v1021 = vld [vmem:[#allocation9 + $0x74] sm:$0xf]
        %v1022 = vld [vmem:[#allocation9 + $0x78] sm:$0xf]
        %v1023 = vld [vmem:[#allocation9 + $0x7c] sm:$0xf]
        %v1024 = vld [vmem:[#allocation9 + $0x80] sm:$0xf]
        %v1025 = vld [vmem:[#allocation9 + $0x84] sm:$0xf]
        %v1026 = vld [vmem:[#allocation9 + $0x88] sm:$0xf]
        %v1027 = vld [vmem:[#allocation9 + $0x8c] sm:$0xf]
        %v1028 = vld [vmem:[#allocation9 + $0x90] sm:$0xf]
        %v1029 = vld [vmem:[#allocation9 + $0x94] sm:$0xf]
        %v1030 = vld [vmem:[#allocation9 + $0x98] sm:$0xf]
        %v1031 = vld [vmem:[#allocation9 + $0x9c] sm:$0xf]
        %v1032 = vld [vmem:[#allocation9 + $0xa0] sm:$0xf]
        %v1033 = vld [vmem:[#allocation9 + $0xa4] sm:$0xf]
        %v1034 = vld [vmem:[#allocation9 + $0xa8] sm:$0xf]
        %v1035 = vld [vmem:[#allocation9 + $0xac] sm:$0xf]
        %v1036 = vld [vmem:[#allocation9 + $0xb0] sm:$0xf]
        %v1037 = vld [vmem:[#allocation9 + $0xb4] sm:$0xf]
        %v1038 = vld [vmem:[#allocation9 + $0xb8] sm:$0xf]
        %v1039 = vld [vmem:[#allocation9 + $0xbc] sm:$0xf]
        %v1088 = vunpack.c.l.b16 %v992
        %v1089 = vunpack.c.l.b16 %v993
        %v1090 = vunpack.c.l.b16 %v994
        %v1091 = vunpack.c.l.b16 %v995
        %v1092 = vunpack.c.l.b16 %v996
        %v1093 = vunpack.c.l.b16 %v997
        %v1094 = vunpack.c.l.b16 %v998
        %v1095 = vunpack.c.l.b16 %v999
        %v1096 = vunpack.c.l.b16 %v1000
        %v1097 = vunpack.c.l.b16 %v1001
        %v1098 = vunpack.c.l.b16 %v1002
        %v1099 = vunpack.c.l.b16 %v1003
        %v1100 = vunpack.c.l.b16 %v1004
        %v1101 = vunpack.c.l.b16 %v1005
        %v1102 = vunpack.c.l.b16 %v1006
        %v1103 = vunpack.c.l.b16 %v1007
        %v1104 = vunpack.c.l.b16 %v1008
        %v1105 = vunpack.c.l.b16 %v1009
        %v1106 = vunpack.c.l.b16 %v1010
        %v1107 = vunpack.c.l.b16 %v1011
        %v1108 = vunpack.c.l.b16 %v1012
        %v1109 = vunpack.c.l.b16 %v1013
        %v1110 = vunpack.c.l.b16 %v1014
        %v1111 = vunpack.c.l.b16 %v1015
        %v1112 = vunpack.c.l.b16 %v1016
        %v1113 = vunpack.c.l.b16 %v1017
        %v1114 = vunpack.c.l.b16 %v1018
        %v1115 = vunpack.c.l.b16 %v1019
        %v1116 = vunpack.c.l.b16 %v1020
        %v1117 = vunpack.c.l.b16 %v1021
        %v1118 = vunpack.c.l.b16 %v1022
        %v1119 = vunpack.c.l.b16 %v1023
        %v1120 = vunpack.c.l.b16 %v1024
        %v1121 = vunpack.c.l.b16 %v1025
        %v1122 = vunpack.c.l.b16 %v1026
        %v1123 = vunpack.c.l.b16 %v1027
        %v1124 = vunpack.c.l.b16 %v1028
        %v1125 = vunpack.c.l.b16 %v1029
        %v1126 = vunpack.c.l.b16 %v1030
        %v1127 = vunpack.c.l.b16 %v1031
        %v1128 = vunpack.c.l.b16 %v1032
        %v1129 = vunpack.c.l.b16 %v1033
        %v1130 = vunpack.c.l.b16 %v1034
        %v1131 = vunpack.c.l.b16 %v1035
        %v1132 = vunpack.c.l.b16 %v1036
        %v1133 = vunpack.c.l.b16 %v1037
        %v1134 = vunpack.c.l.b16 %v1038
        %v1135 = vunpack.c.l.b16 %v1039
        %v1136 = vpack.c.b16 %v1089, %v1088
        %v1137 = vpack.c.b16 %v1091, %v1090
        %v1138 = vpack.c.b16 %v1093, %v1092
        %v1139 = vpack.c.b16 %v1095, %v1094
        %v1140 = vpack.c.b16 %v1097, %v1096
        %v1141 = vpack.c.b16 %v1099, %v1098
        %v1142 = vpack.c.b16 %v1101, %v1100
        %v1143 = vpack.c.b16 %v1103, %v1102
        %v1144 = vpack.c.b16 %v1105, %v1104
        %v1145 = vpack.c.b16 %v1107, %v1106
        %v1146 = vpack.c.b16 %v1109, %v1108
        %v1147 = vpack.c.b16 %v1111, %v1110
        %v1148 = vpack.c.b16 %v1113, %v1112
        %v1149 = vpack.c.b16 %v1115, %v1114
        %v1150 = vpack.c.b16 %v1117, %v1116
        %v1151 = vpack.c.b16 %v1119, %v1118
        %v1152 = vpack.c.b16 %v1121, %v1120
        %v1153 = vpack.c.b16 %v1123, %v1122
        %v1154 = vpack.c.b16 %v1125, %v1124
        %v1155 = vpack.c.b16 %v1127, %v1126
        %v1156 = vpack.c.b16 %v1129, %v1128
        %v1157 = vpack.c.b16 %v1131, %v1130
        %v1158 = vpack.c.b16 %v1133, %v1132
        %v1159 = vpack.c.b16 %v1135, %v1134
        %1184 = vmatprep.subr.bf16.mxu0 0
        %1185 = vmatpush1.bf16.msra.mxu0 %v1143
        %1186 = vmatprep.subr.bf16.mxu0 0
        %1187 = vmatpush1.bf16.msra.mxu0 %v1142
        %1188 = vmatprep.subr.bf16.mxu0 0
        %1189 = vmatpush1.bf16.msra.mxu0 %v1141
        %1190 = vmatprep.subr.bf16.mxu0 0
        %1191 = vmatpush1.bf16.msra.mxu0 %v1140
        %1192 = vmatprep.subr.bf16.mxu0 0
        %1193 = vmatpush1.bf16.msra.mxu0 %v1139
        %1194 = vmatprep.subr.bf16.mxu0 0
        %1195 = vmatpush1.bf16.msra.mxu0 %v1138
        %1196 = vmatprep.subr.bf16.mxu0 0
        %1197 = vmatpush1.bf16.msra.mxu0 %v1137
        %1198 = vmatprep.subr.bf16.mxu0 0
        %1199 = vmatpush1.bf16.msra.mxu0 %v1136
        %1200 = vmatprep.subr.bf16.mxu0 0
        %1201 = vmatpush2.bf16.msra.mxu0 %v1151
        %1202 = vmatprep.subr.bf16.mxu0 0
        %1203 = vmatpush2.bf16.msra.mxu0 %v1150
        %1204 = vmatprep.subr.bf16.mxu0 0
        %1205 = vmatpush2.bf16.msra.mxu0 %v1149
        %1206 = vmatprep.subr.bf16.mxu0 0
        %1207 = vmatpush2.bf16.msra.mxu0 %v1148
        %1208 = vmatprep.subr.bf16.mxu0 0
        %1209 = vmatpush2.bf16.msra.mxu0 %v1147
        %1210 = vmatprep.subr.bf16.mxu0 0
        %1211 = vmatpush2.bf16.msra.mxu0 %v1146
        %1212 = vmatprep.subr.bf16.mxu0 0
        %1213 = vmatpush2.bf16.msra.mxu0 %v1145
        %1214 = vmatprep.subr.bf16.mxu0 0
        %1215 = vmatpush2.bf16.msra.mxu0 %v1144
        %1216 = vmatprep.mubr.bf16.mxu0 %v989
        %1217 = vmatmul.mubr.bf16.gmra.mxu0 %v988
        %v1218 = vpop.f32.mrf.mxu0
        %v1219 = vadd.f32 0.0, %v1218
        %v1220 = vpop.f32.mrf.mxu0
        %v1221 = vpop.f32.mrf.mxu0
        %v1222 = vadd.f32 0.0, %v1221
        %v1223 = vpop.f32.mrf.mxu0
        %1224 = vdwg.mxu0
        %1225 = vmatprep.subr.bf16.mxu0 0
        %1226 = vmatpush1.bf16.msra.mxu0 %v1159
        %1227 = vmatprep.subr.bf16.mxu0 0
        %1228 = vmatpush1.bf16.msra.mxu0 %v1158
        %1229 = vmatprep.subr.bf16.mxu0 0
        %1230 = vmatpush1.bf16.msra.mxu0 %v1157
        %1231 = vmatprep.subr.bf16.mxu0 0
        %1232 = vmatpush1.bf16.msra.mxu0 %v1156
        %1233 = vmatprep.subr.bf16.mxu0 0
        %1234 = vmatpush1.bf16.msra.mxu0 %v1155
        %1235 = vmatprep.subr.bf16.mxu0 0
        %1236 = vmatpush1.bf16.msra.mxu0 %v1154
        %1237 = vmatprep.subr.bf16.mxu0 0
        %1238 = vmatpush1.bf16.msra.mxu0 %v1153
        %1239 = vmatprep.subr.bf16.mxu0 0
        %1240 = vmatpush1.bf16.msra.mxu0 %v1152
        %1241 = vmatprep.subr.bf16.mxu0 0
        %1242 = vmatpush2.bf16.msra.mxu0 0
        %1243 = vmatprep.subr.bf16.mxu0 0
        %1244 = vmatpush2.bf16.msra.mxu0 0
        %1245 = vmatprep.subr.bf16.mxu0 0
        %1246 = vmatpush2.bf16.msra.mxu0 0
        %1247 = vmatprep.subr.bf16.mxu0 0
        %1248 = vmatpush2.bf16.msra.mxu0 0
        %1249 = vmatprep.subr.bf16.mxu0 0
        %1250 = vmatpush2.bf16.msra.mxu0 0
        %1251 = vmatprep.subr.bf16.mxu0 0
        %1252 = vmatpush2.bf16.msra.mxu0 0
        %1253 = vmatprep.subr.bf16.mxu0 0
        %1254 = vmatpush2.bf16.msra.mxu0 0
        %1255 = vmatprep.subr.bf16.mxu0 0
        %1256 = vmatpush2.bf16.msra.mxu0 0
        %1257 = vmatprep.mubr.bf16.mxu0 0
        %1258 = vmatmul.mubr.bf16.gmra.mxu0 %v990
        %v1259 = vpop.f32.mrf.mxu0
        %v1260 = vadd.f32 %v1219, %v1259
        %v1261 = vpop.f32.mrf.mxu0
        %v1262 = vpop.f32.mrf.mxu0
        %v1263 = vadd.f32 %v1222, %v1262
        %v1264 = vpop.f32.mrf.mxu0
        %1265 = vdwg.mxu0
        %v1267 = vlaneseq
        %v1268 = vshrl.u32 %v1267, 7
        %v1269 = vsub.s32 0, %v1268
        %v1270 = vrot.slane %v991, %v1269
        %v1272 = vadd.f32 %v1270, %v1260
        %v1273 = vadd.f32 %v1270, %v1263
        %v1274 = vadd.f32 %v1272, %v684
        %v1275 = vadd.f32 %v1273, %v685
        %v1276 = vld [vmem:[%s599] sm:$0xff]
        %v1277 = vld [vmem:[%s599 + $0x8] sm:$0xff]
        %v1278 = vmax.f32 %v1276, 0.0
        %v1279 = vmax.f32 %v1277, 0.0
        %1280 = vst [vmem:[#allocation2 + $0x8] sm:$0xff] %v1278
        %1281 = vst [vmem:[#allocation2 + $0x10] sm:$0xff] %v1279
        %v1282 = vld [vmem:[#allocation2 + $0x7] sm:$0xff]
        %v1283 = vld [vmem:[#allocation2 + $0xf] sm:$0xff]
        %v1284 = vld [vmem:[#allocation2 + $0x9] sm:$0xff]
        %v1285 = vld [vmem:[#allocation2 + $0x11] sm:$0xff]
        %v1286 = vpack.c.bf16 %v1283, %v1282
        %v1287 = vpack.c.bf16 %v1279, %v1278
        %v1288 = vpack.c.bf16 %v1285, %v1284
        %v1289 = vld [vmem:[%s7] sm:$0x1]
        %v1290 = vld [vmem:[#allocation11] sm:$0xf]
        %v1291 = vld [vmem:[#allocation11 + $0x4] sm:$0xf]
        %v1292 = vld [vmem:[#allocation11 + $0x8] sm:$0xf]
        %v1293 = vld [vmem:[#allocation11 + $0xc] sm:$0xf]
        %v1294 = vld [vmem:[#allocation11 + $0x10] sm:$0xf]
        %v1295 = vld [vmem:[#allocation11 + $0x14] sm:$0xf]
        %v1296 = vld [vmem:[#allocation11 + $0x18] sm:$0xf]
        %v1297 = vld [vmem:[#allocation11 + $0x1c] sm:$0xf]
        %v1298 = vld [vmem:[#allocation11 + $0x20] sm:$0xf]
        %v1299 = vld [vmem:[#allocation11 + $0x24] sm:$0xf]
        %v1300 = vld [vmem:[#allocation11 + $0x28] sm:$0xf]
        %v1301 = vld [vmem:[#allocation11 + $0x2c] sm:$0xf]
        %v1302 = vld [vmem:[#allocation11 + $0x30] sm:$0xf]
        %v1303 = vld [vmem:[#allocation11 + $0x34] sm:$0xf]
        %v1304 = vld [vmem:[#allocation11 + $0x38] sm:$0xf]
        %v1305 = vld [vmem:[#allocation11 + $0x3c] sm:$0xf]
        %v1306 = vld [vmem:[#allocation11 + $0x40] sm:$0xf]
        %v1307 = vld [vmem:[#allocation11 + $0x44] sm:$0xf]
        %v1308 = vld [vmem:[#allocation11 + $0x48] sm:$0xf]
        %v1309 = vld [vmem:[#allocation11 + $0x4c] sm:$0xf]
        %v1310 = vld [vmem:[#allocation11 + $0x50] sm:$0xf]
        %v1311 = vld [vmem:[#allocation11 + $0x54] sm:$0xf]
        %v1312 = vld [vmem:[#allocation11 + $0x58] sm:$0xf]
        %v1313 = vld [vmem:[#allocation11 + $0x5c] sm:$0xf]
        %v1314 = vld [vmem:[#allocation11 + $0x60] sm:$0xf]
        %v1315 = vld [vmem:[#allocation11 + $0x64] sm:$0xf]
        %v1316 = vld [vmem:[#allocation11 + $0x68] sm:$0xf]
        %v1317 = vld [vmem:[#allocation11 + $0x6c] sm:$0xf]
        %v1318 = vld [vmem:[#allocation11 + $0x70] sm:$0xf]
        %v1319 = vld [vmem:[#allocation11 + $0x74] sm:$0xf]
        %v1320 = vld [vmem:[#allocation11 + $0x78] sm:$0xf]
        %v1321 = vld [vmem:[#allocation11 + $0x7c] sm:$0xf]
        %v1322 = vld [vmem:[#allocation11 + $0x80] sm:$0xf]
        %v1323 = vld [vmem:[#allocation11 + $0x84] sm:$0xf]
        %v1324 = vld [vmem:[#allocation11 + $0x88] sm:$0xf]
        %v1325 = vld [vmem:[#allocation11 + $0x8c] sm:$0xf]
        %v1326 = vld [vmem:[#allocation11 + $0x90] sm:$0xf]
        %v1327 = vld [vmem:[#allocation11 + $0x94] sm:$0xf]
        %v1328 = vld [vmem:[#allocation11 + $0x98] sm:$0xf]
        %v1329 = vld [vmem:[#allocation11 + $0x9c] sm:$0xf]
        %v1330 = vld [vmem:[#allocation11 + $0xa0] sm:$0xf]
        %v1331 = vld [vmem:[#allocation11 + $0xa4] sm:$0xf]
        %v1332 = vld [vmem:[#allocation11 + $0xa8] sm:$0xf]
        %v1333 = vld [vmem:[#allocation11 + $0xac] sm:$0xf]
        %v1334 = vld [vmem:[#allocation11 + $0xb0] sm:$0xf]
        %v1335 = vld [vmem:[#allocation11 + $0xb4] sm:$0xf]
        %v1336 = vld [vmem:[#allocation11 + $0xb8] sm:$0xf]
        %v1337 = vld [vmem:[#allocation11 + $0xbc] sm:$0xf]
        %v1386 = vunpack.c.l.b16 %v1290
        %v1387 = vunpack.c.l.b16 %v1291
        %v1388 = vunpack.c.l.b16 %v1292
        %v1389 = vunpack.c.l.b16 %v1293
        %v1390 = vunpack.c.l.b16 %v1294
        %v1391 = vunpack.c.l.b16 %v1295
        %v1392 = vunpack.c.l.b16 %v1296
        %v1393 = vunpack.c.l.b16 %v1297
        %v1394 = vunpack.c.l.b16 %v1298
        %v1395 = vunpack.c.l.b16 %v1299
        %v1396 = vunpack.c.l.b16 %v1300
        %v1397 = vunpack.c.l.b16 %v1301
        %v1398 = vunpack.c.l.b16 %v1302
        %v1399 = vunpack.c.l.b16 %v1303
        %v1400 = vunpack.c.l.b16 %v1304
        %v1401 = vunpack.c.l.b16 %v1305
        %v1402 = vunpack.c.l.b16 %v1306
        %v1403 = vunpack.c.l.b16 %v1307
        %v1404 = vunpack.c.l.b16 %v1308
        %v1405 = vunpack.c.l.b16 %v1309
        %v1406 = vunpack.c.l.b16 %v1310
        %v1407 = vunpack.c.l.b16 %v1311
        %v1408 = vunpack.c.l.b16 %v1312
        %v1409 = vunpack.c.l.b16 %v1313
        %v1410 = vunpack.c.l.b16 %v1314
        %v1411 = vunpack.c.l.b16 %v1315
        %v1412 = vunpack.c.l.b16 %v1316
        %v1413 = vunpack.c.l.b16 %v1317
        %v1414 = vunpack.c.l.b16 %v1318
        %v1415 = vunpack.c.l.b16 %v1319
        %v1416 = vunpack.c.l.b16 %v1320
        %v1417 = vunpack.c.l.b16 %v1321
        %v1418 = vunpack.c.l.b16 %v1322
        %v1419 = vunpack.c.l.b16 %v1323
        %v1420 = vunpack.c.l.b16 %v1324
        %v1421 = vunpack.c.l.b16 %v1325
        %v1422 = vunpack.c.l.b16 %v1326
        %v1423 = vunpack.c.l.b16 %v1327
        %v1424 = vunpack.c.l.b16 %v1328
        %v1425 = vunpack.c.l.b16 %v1329
        %v1426 = vunpack.c.l.b16 %v1330
        %v1427 = vunpack.c.l.b16 %v1331
        %v1428 = vunpack.c.l.b16 %v1332
        %v1429 = vunpack.c.l.b16 %v1333
        %v1430 = vunpack.c.l.b16 %v1334
        %v1431 = vunpack.c.l.b16 %v1335
        %v1432 = vunpack.c.l.b16 %v1336
        %v1433 = vunpack.c.l.b16 %v1337
        %v1434 = vpack.c.b16 %v1387, %v1386
        %v1435 = vpack.c.b16 %v1389, %v1388
        %v1436 = vpack.c.b16 %v1391, %v1390
        %v1437 = vpack.c.b16 %v1393, %v1392
        %v1438 = vpack.c.b16 %v1395, %v1394
        %v1439 = vpack.c.b16 %v1397, %v1396
        %v1440 = vpack.c.b16 %v1399, %v1398
        %v1441 = vpack.c.b16 %v1401, %v1400
        %v1442 = vpack.c.b16 %v1403, %v1402
        %v1443 = vpack.c.b16 %v1405, %v1404
        %v1444 = vpack.c.b16 %v1407, %v1406
        %v1445 = vpack.c.b16 %v1409, %v1408
        %v1446 = vpack.c.b16 %v1411, %v1410
        %v1447 = vpack.c.b16 %v1413, %v1412
        %v1448 = vpack.c.b16 %v1415, %v1414
        %v1449 = vpack.c.b16 %v1417, %v1416
        %v1450 = vpack.c.b16 %v1419, %v1418
        %v1451 = vpack.c.b16 %v1421, %v1420
        %v1452 = vpack.c.b16 %v1423, %v1422
        %v1453 = vpack.c.b16 %v1425, %v1424
        %v1454 = vpack.c.b16 %v1427, %v1426
        %v1455 = vpack.c.b16 %v1429, %v1428
        %v1456 = vpack.c.b16 %v1431, %v1430
        %v1457 = vpack.c.b16 %v1433, %v1432
        %1482 = vmatprep.subr.bf16.mxu0 0
        %1483 = vmatpush1.bf16.msra.mxu0 %v1441
        %1484 = vmatprep.subr.bf16.mxu0 0
        %1485 = vmatpush1.bf16.msra.mxu0 %v1440
        %1486 = vmatprep.subr.bf16.mxu0 0
        %1487 = vmatpush1.bf16.msra.mxu0 %v1439
        %1488 = vmatprep.subr.bf16.mxu0 0
        %1489 = vmatpush1.bf16.msra.mxu0 %v1438
        %1490 = vmatprep.subr.bf16.mxu0 0
        %1491 = vmatpush1.bf16.msra.mxu0 %v1437
        %1492 = vmatprep.subr.bf16.mxu0 0
        %1493 = vmatpush1.bf16.msra.mxu0 %v1436
        %1494 = vmatprep.subr.bf16.mxu0 0
        %1495 = vmatpush1.bf16.msra.mxu0 %v1435
        %1496 = vmatprep.subr.bf16.mxu0 0
        %1497 = vmatpush1.bf16.msra.mxu0 %v1434
        %1498 = vmatprep.subr.bf16.mxu0 0
        %1499 = vmatpush2.bf16.msra.mxu0 %v1449
        %1500 = vmatprep.subr.bf16.mxu0 0
        %1501 = vmatpush2.bf16.msra.mxu0 %v1448
        %1502 = vmatprep.subr.bf16.mxu0 0
        %1503 = vmatpush2.bf16.msra.mxu0 %v1447
        %1504 = vmatprep.subr.bf16.mxu0 0
        %1505 = vmatpush2.bf16.msra.mxu0 %v1446
        %1506 = vmatprep.subr.bf16.mxu0 0
        %1507 = vmatpush2.bf16.msra.mxu0 %v1445
        %1508 = vmatprep.subr.bf16.mxu0 0
        %1509 = vmatpush2.bf16.msra.mxu0 %v1444
        %1510 = vmatprep.subr.bf16.mxu0 0
        %1511 = vmatpush2.bf16.msra.mxu0 %v1443
        %1512 = vmatprep.subr.bf16.mxu0 0
        %1513 = vmatpush2.bf16.msra.mxu0 %v1442
        %1514 = vmatprep.mubr.bf16.mxu0 %v1287
        %1515 = vmatmul.mubr.bf16.gmra.mxu0 %v1286
        %v1516 = vpop.f32.mrf.mxu0
        %v1517 = vadd.f32 0.0, %v1516
        %v1518 = vpop.f32.mrf.mxu0
        %v1519 = vpop.f32.mrf.mxu0
        %v1520 = vadd.f32 0.0, %v1519
        %v1521 = vpop.f32.mrf.mxu0
        %1522 = vdwg.mxu0
        %1523 = vmatprep.subr.bf16.mxu0 0
        %1524 = vmatpush1.bf16.msra.mxu0 %v1457
        %1525 = vmatprep.subr.bf16.mxu0 0
        %1526 = vmatpush1.bf16.msra.mxu0 %v1456
        %1527 = vmatprep.subr.bf16.mxu0 0
        %1528 = vmatpush1.bf16.msra.mxu0 %v1455
        %1529 = vmatprep.subr.bf16.mxu0 0
        %1530 = vmatpush1.bf16.msra.mxu0 %v1454
        %1531 = vmatprep.subr.bf16.mxu0 0
        %1532 = vmatpush1.bf16.msra.mxu0 %v1453
        %1533 = vmatprep.subr.bf16.mxu0 0
        %1534 = vmatpush1.bf16.msra.mxu0 %v1452
        %1535 = vmatprep.subr.bf16.mxu0 0
        %1536 = vmatpush1.bf16.msra.mxu0 %v1451
        %1537 = vmatprep.subr.bf16.mxu0 0
        %1538 = vmatpush1.bf16.msra.mxu0 %v1450
        %1539 = vmatprep.subr.bf16.mxu0 0
        %1540 = vmatpush2.bf16.msra.mxu0 0
        %1541 = vmatprep.subr.bf16.mxu0 0
        %1542 = vmatpush2.bf16.msra.mxu0 0
        %1543 = vmatprep.subr.bf16.mxu0 0
        %1544 = vmatpush2.bf16.msra.mxu0 0
        %1545 = vmatprep.subr.bf16.mxu0 0
        %1546 = vmatpush2.bf16.msra.mxu0 0
        %1547 = vmatprep.subr.bf16.mxu0 0
        %1548 = vmatpush2.bf16.msra.mxu0 0
        %1549 = vmatprep.subr.bf16.mxu0 0
        %1550 = vmatpush2.bf16.msra.mxu0 0
        %1551 = vmatprep.subr.bf16.mxu0 0
        %1552 = vmatpush2.bf16.msra.mxu0 0
        %1553 = vmatprep.subr.bf16.mxu0 0
        %1554 = vmatpush2.bf16.msra.mxu0 0
        %1555 = vmatprep.mubr.bf16.mxu0 0
        %1556 = vmatmul.mubr.bf16.gmra.mxu0 %v1288
        %v1557 = vpop.f32.mrf.mxu0
        %v1558 = vadd.f32 %v1517, %v1557
        %v1559 = vpop.f32.mrf.mxu0
        %v1560 = vpop.f32.mrf.mxu0
        %v1561 = vadd.f32 %v1520, %v1560
        %v1562 = vpop.f32.mrf.mxu0
        %1563 = vdwg.mxu0
        %v1565 = vlaneseq
        %v1566 = vshrl.u32 %v1565, 7
        %v1567 = vsub.s32 0, %v1566
        %v1568 = vrot.slane %v1289, %v1567
        %v1570 = vadd.f32 %v1568, %v1558
        %v1571 = vadd.f32 %v1568, %v1561
        %v1572 = vmax.f32 %v1570, 0.0
        %v1573 = vmax.f32 %v1571, 0.0
        %1574 = vst [vmem:[#allocation2 + $0x8] sm:$0xff] %v1572
        %1575 = vst [vmem:[#allocation2 + $0x10] sm:$0xff] %v1573
        %v1576 = vld [vmem:[#allocation2 + $0x7] sm:$0xff]
        %v1577 = vld [vmem:[#allocation2 + $0xf] sm:$0xff]
        %v1578 = vld [vmem:[#allocation2 + $0x9] sm:$0xff]
        %v1579 = vld [vmem:[#allocation2 + $0x11] sm:$0xff]
        %v1580 = vpack.c.bf16 %v1577, %v1576
        %v1581 = vpack.c.bf16 %v1573, %v1572
        %v1582 = vpack.c.bf16 %v1579, %v1578
        %v1583 = vld [vmem:[%s9] sm:$0x1]
        %v1584 = vld [vmem:[#allocation12] sm:$0xf]
        %v1585 = vld [vmem:[#allocation12 + $0x4] sm:$0xf]
        %v1586 = vld [vmem:[#allocation12 + $0x8] sm:$0xf]
        %v1587 = vld [vmem:[#allocation12 + $0xc] sm:$0xf]
        %v1588 = vld [vmem:[#allocation12 + $0x10] sm:$0xf]
        %v1589 = vld [vmem:[#allocation12 + $0x14] sm:$0xf]
        %v1590 = vld [vmem:[#allocation12 + $0x18] sm:$0xf]
        %v1591 = vld [vmem:[#allocation12 + $0x1c] sm:$0xf]
        %v1592 = vld [vmem:[#allocation12 + $0x20] sm:$0xf]
        %v1593 = vld [vmem:[#allocation12 + $0x24] sm:$0xf]
        %v1594 = vld [vmem:[#allocation12 + $0x28] sm:$0xf]
        %v1595 = vld [vmem:[#allocation12 + $0x2c] sm:$0xf]
        %v1596 = vld [vmem:[#allocation12 + $0x30] sm:$0xf]
        %v1597 = vld [vmem:[#allocation12 + $0x34] sm:$0xf]
        %v1598 = vld [vmem:[#allocation12 + $0x38] sm:$0xf]
        %v1599 = vld [vmem:[#allocation12 + $0x3c] sm:$0xf]
        %v1600 = vld [vmem:[#allocation12 + $0x40] sm:$0xf]
        %v1601 = vld [vmem:[#allocation12 + $0x44] sm:$0xf]
        %v1602 = vld [vmem:[#allocation12 + $0x48] sm:$0xf]
        %v1603 = vld [vmem:[#allocation12 + $0x4c] sm:$0xf]
        %v1604 = vld [vmem:[#allocation12 + $0x50] sm:$0xf]
        %v1605 = vld [vmem:[#allocation12 + $0x54] sm:$0xf]
        %v1606 = vld [vmem:[#allocation12 + $0x58] sm:$0xf]
        %v1607 = vld [vmem:[#allocation12 + $0x5c] sm:$0xf]
        %v1608 = vld [vmem:[#allocation12 + $0x60] sm:$0xf]
        %v1609 = vld [vmem:[#allocation12 + $0x64] sm:$0xf]
        %v1610 = vld [vmem:[#allocation12 + $0x68] sm:$0xf]
        %v1611 = vld [vmem:[#allocation12 + $0x6c] sm:$0xf]
        %v1612 = vld [vmem:[#allocation12 + $0x70] sm:$0xf]
        %v1613 = vld [vmem:[#allocation12 + $0x74] sm:$0xf]
        %v1614 = vld [vmem:[#allocation12 + $0x78] sm:$0xf]
        %v1615 = vld [vmem:[#allocation12 + $0x7c] sm:$0xf]
        %v1616 = vld [vmem:[#allocation12 + $0x80] sm:$0xf]
        %v1617 = vld [vmem:[#allocation12 + $0x84] sm:$0xf]
        %v1618 = vld [vmem:[#allocation12 + $0x88] sm:$0xf]
        %v1619 = vld [vmem:[#allocation12 + $0x8c] sm:$0xf]
        %v1620 = vld [vmem:[#allocation12 + $0x90] sm:$0xf]
        %v1621 = vld [vmem:[#allocation12 + $0x94] sm:$0xf]
        %v1622 = vld [vmem:[#allocation12 + $0x98] sm:$0xf]
        %v1623 = vld [vmem:[#allocation12 + $0x9c] sm:$0xf]
        %v1624 = vld [vmem:[#allocation12 + $0xa0] sm:$0xf]
        %v1625 = vld [vmem:[#allocation12 + $0xa4] sm:$0xf]
        %v1626 = vld [vmem:[#allocation12 + $0xa8] sm:$0xf]
        %v1627 = vld [vmem:[#allocation12 + $0xac] sm:$0xf]
        %v1628 = vld [vmem:[#allocation12 + $0xb0] sm:$0xf]
        %v1629 = vld [vmem:[#allocation12 + $0xb4] sm:$0xf]
        %v1630 = vld [vmem:[#allocation12 + $0xb8] sm:$0xf]
        %v1631 = vld [vmem:[#allocation12 + $0xbc] sm:$0xf]
        %v1680 = vunpack.c.l.b16 %v1584
        %v1681 = vunpack.c.l.b16 %v1585
        %v1682 = vunpack.c.l.b16 %v1586
        %v1683 = vunpack.c.l.b16 %v1587
        %v1684 = vunpack.c.l.b16 %v1588
        %v1685 = vunpack.c.l.b16 %v1589
        %v1686 = vunpack.c.l.b16 %v1590
        %v1687 = vunpack.c.l.b16 %v1591
        %v1688 = vunpack.c.l.b16 %v1592
        %v1689 = vunpack.c.l.b16 %v1593
        %v1690 = vunpack.c.l.b16 %v1594
        %v1691 = vunpack.c.l.b16 %v1595
        %v1692 = vunpack.c.l.b16 %v1596
        %v1693 = vunpack.c.l.b16 %v1597
        %v1694 = vunpack.c.l.b16 %v1598
        %v1695 = vunpack.c.l.b16 %v1599
        %v1696 = vunpack.c.l.b16 %v1600
        %v1697 = vunpack.c.l.b16 %v1601
        %v1698 = vunpack.c.l.b16 %v1602
        %v1699 = vunpack.c.l.b16 %v1603
        %v1700 = vunpack.c.l.b16 %v1604
        %v1701 = vunpack.c.l.b16 %v1605
        %v1702 = vunpack.c.l.b16 %v1606
        %v1703 = vunpack.c.l.b16 %v1607
        %v1704 = vunpack.c.l.b16 %v1608
        %v1705 = vunpack.c.l.b16 %v1609
        %v1706 = vunpack.c.l.b16 %v1610
        %v1707 = vunpack.c.l.b16 %v1611
        %v1708 = vunpack.c.l.b16 %v1612
        %v1709 = vunpack.c.l.b16 %v1613
        %v1710 = vunpack.c.l.b16 %v1614
        %v1711 = vunpack.c.l.b16 %v1615
        %v1712 = vunpack.c.l.b16 %v1616
        %v1713 = vunpack.c.l.b16 %v1617
        %v1714 = vunpack.c.l.b16 %v1618
        %v1715 = vunpack.c.l.b16 %v1619
        %v1716 = vunpack.c.l.b16 %v1620
        %v1717 = vunpack.c.l.b16 %v1621
        %v1718 = vunpack.c.l.b16 %v1622
        %v1719 = vunpack.c.l.b16 %v1623
        %v1720 = vunpack.c.l.b16 %v1624
        %v1721 = vunpack.c.l.b16 %v1625
        %v1722 = vunpack.c.l.b16 %v1626
        %v1723 = vunpack.c.l.b16 %v1627
        %v1724 = vunpack.c.l.b16 %v1628
        %v1725 = vunpack.c.l.b16 %v1629
        %v1726 = vunpack.c.l.b16 %v1630
        %v1727 = vunpack.c.l.b16 %v1631
        %v1728 = vpack.c.b16 %v1681, %v1680
        %v1729 = vpack.c.b16 %v1683, %v1682
        %v1730 = vpack.c.b16 %v1685, %v1684
        %v1731 = vpack.c.b16 %v1687, %v1686
        %v1732 = vpack.c.b16 %v1689, %v1688
        %v1733 = vpack.c.b16 %v1691, %v1690
        %v1734 = vpack.c.b16 %v1693, %v1692
        %v1735 = vpack.c.b16 %v1695, %v1694
        %v1736 = vpack.c.b16 %v1697, %v1696
        %v1737 = vpack.c.b16 %v1699, %v1698
        %v1738 = vpack.c.b16 %v1701, %v1700
        %v1739 = vpack.c.b16 %v1703, %v1702
        %v1740 = vpack.c.b16 %v1705, %v1704
        %v1741 = vpack.c.b16 %v1707, %v1706
        %v1742 = vpack.c.b16 %v1709, %v1708
        %v1743 = vpack.c.b16 %v1711, %v1710
        %v1744 = vpack.c.b16 %v1713, %v1712
        %v1745 = vpack.c.b16 %v1715, %v1714
        %v1746 = vpack.c.b16 %v1717, %v1716
        %v1747 = vpack.c.b16 %v1719, %v1718
        %v1748 = vpack.c.b16 %v1721, %v1720
        %v1749 = vpack.c.b16 %v1723, %v1722
        %v1750 = vpack.c.b16 %v1725, %v1724
        %v1751 = vpack.c.b16 %v1727, %v1726
        %1776 = vmatprep.subr.bf16.mxu0 0
        %1777 = vmatpush1.bf16.msra.mxu0 %v1735
        %1778 = vmatprep.subr.bf16.mxu0 0
        %1779 = vmatpush1.bf16.msra.mxu0 %v1734
        %1780 = vmatprep.subr.bf16.mxu0 0
        %1781 = vmatpush1.bf16.msra.mxu0 %v1733
        %1782 = vmatprep.subr.bf16.mxu0 0
        %1783 = vmatpush1.bf16.msra.mxu0 %v1732
        %1784 = vmatprep.subr.bf16.mxu0 0
        %1785 = vmatpush1.bf16.msra.mxu0 %v1731
        %1786 = vmatprep.subr.bf16.mxu0 0
        %1787 = vmatpush1.bf16.msra.mxu0 %v1730
        %1788 = vmatprep.subr.bf16.mxu0 0
        %1789 = vmatpush1.bf16.msra.mxu0 %v1729
        %1790 = vmatprep.subr.bf16.mxu0 0
        %1791 = vmatpush1.bf16.msra.mxu0 %v1728
        %1792 = vmatprep.subr.bf16.mxu0 0
        %1793 = vmatpush2.bf16.msra.mxu0 %v1743
        %1794 = vmatprep.subr.bf16.mxu0 0
        %1795 = vmatpush2.bf16.msra.mxu0 %v1742
        %1796 = vmatprep.subr.bf16.mxu0 0
        %1797 = vmatpush2.bf16.msra.mxu0 %v1741
        %1798 = vmatprep.subr.bf16.mxu0 0
        %1799 = vmatpush2.bf16.msra.mxu0 %v1740
        %1800 = vmatprep.subr.bf16.mxu0 0
        %1801 = vmatpush2.bf16.msra.mxu0 %v1739
        %1802 = vmatprep.subr.bf16.mxu0 0
        %1803 = vmatpush2.bf16.msra.mxu0 %v1738
        %1804 = vmatprep.subr.bf16.mxu0 0
        %1805 = vmatpush2.bf16.msra.mxu0 %v1737
        %1806 = vmatprep.subr.bf16.mxu0 0
        %1807 = vmatpush2.bf16.msra.mxu0 %v1736
        %1808 = vmatprep.mubr.bf16.mxu0 %v1581
        %1809 = vmatmul.mubr.bf16.gmra.mxu0 %v1580
        %v1810 = vpop.f32.mrf.mxu0
        %v1811 = vadd.f32 0.0, %v1810
        %v1812 = vpop.f32.mrf.mxu0
        %v1813 = vpop.f32.mrf.mxu0
        %v1814 = vadd.f32 0.0, %v1813
        %v1815 = vpop.f32.mrf.mxu0
        %1816 = vdwg.mxu0
        %1817 = vmatprep.subr.bf16.mxu0 0
        %1818 = vmatpush1.bf16.msra.mxu0 %v1751
        %1819 = vmatprep.subr.bf16.mxu0 0
        %1820 = vmatpush1.bf16.msra.mxu0 %v1750
        %1821 = vmatprep.subr.bf16.mxu0 0
        %1822 = vmatpush1.bf16.msra.mxu0 %v1749
        %1823 = vmatprep.subr.bf16.mxu0 0
        %1824 = vmatpush1.bf16.msra.mxu0 %v1748
        %1825 = vmatprep.subr.bf16.mxu0 0
        %1826 = vmatpush1.bf16.msra.mxu0 %v1747
        %1827 = vmatprep.subr.bf16.mxu0 0
        %1828 = vmatpush1.bf16.msra.mxu0 %v1746
        %1829 = vmatprep.subr.bf16.mxu0 0
        %1830 = vmatpush1.bf16.msra.mxu0 %v1745
        %1831 = vmatprep.subr.bf16.mxu0 0
        %1832 = vmatpush1.bf16.msra.mxu0 %v1744
        %1833 = vmatprep.subr.bf16.mxu0 0
        %1834 = vmatpush2.bf16.msra.mxu0 0
        %1835 = vmatprep.subr.bf16.mxu0 0
        %1836 = vmatpush2.bf16.msra.mxu0 0
        %1837 = vmatprep.subr.bf16.mxu0 0
        %1838 = vmatpush2.bf16.msra.mxu0 0
        %1839 = vmatprep.subr.bf16.mxu0 0
        %1840 = vmatpush2.bf16.msra.mxu0 0
        %1841 = vmatprep.subr.bf16.mxu0 0
        %1842 = vmatpush2.bf16.msra.mxu0 0
        %1843 = vmatprep.subr.bf16.mxu0 0
        %1844 = vmatpush2.bf16.msra.mxu0 0
        %1845 = vmatprep.subr.bf16.mxu0 0
        %1846 = vmatpush2.bf16.msra.mxu0 0
        %1847 = vmatprep.subr.bf16.mxu0 0
        %1848 = vmatpush2.bf16.msra.mxu0 0
        %1849 = vmatprep.mubr.bf16.mxu0 0
        %1850 = vmatmul.mubr.bf16.gmra.mxu0 %v1582
        %v1851 = vpop.f32.mrf.mxu0
        %v1852 = vadd.f32 %v1811, %v1851
        %v1853 = vpop.f32.mrf.mxu0
        %v1854 = vpop.f32.mrf.mxu0
        %v1855 = vadd.f32 %v1814, %v1854
        %v1856 = vpop.f32.mrf.mxu0
        %1857 = vdwg.mxu0
        %v1859 = vlaneseq
        %v1860 = vshrl.u32 %v1859, 7
        %v1861 = vsub.s32 0, %v1860
        %v1862 = vrot.slane %v1583, %v1861
        %v1864 = vadd.f32 %v1862, %v1852
        %v1865 = vadd.f32 %v1862, %v1855
        %v1866 = vadd.f32 %v1864, %v1276
        %v1867 = vadd.f32 %v1865, %v1277
        %v1868 = vadd.f32 %v1274, %v1866
        %v1869 = vadd.f32 %v1275, %v1867
        %v1870 = vmax.f32 %v1868, 0.0
        %v1871 = vmax.f32 %v1869, 0.0
        %1872 = vst [vmem:[#allocation2 + $0x8] sm:$0xff] %v1870
        %1873 = vst [vmem:[#allocation2 + $0x10] sm:$0xff] %v1871
        %v1874 = vld [vmem:[#allocation2 + $0x7] sm:$0xff]
        %v1875 = vld [vmem:[#allocation2 + $0xf] sm:$0xff]
        %v1876 = vld [vmem:[#allocation2 + $0x9] sm:$0xff]
        %v1877 = vld [vmem:[#allocation2 + $0x11] sm:$0xff]
        %v1878 = vpack.c.bf16 %v1875, %v1874
        %v1879 = vpack.c.bf16 %v1871, %v1870
        %v1880 = vpack.c.bf16 %v1877, %v1876
        %v1881 = vld [vmem:[%s11] sm:$0x1]
        %v1882 = vld [vmem:[#allocation14] sm:$0xf]
        %v1883 = vld [vmem:[#allocation14 + $0x4] sm:$0xf]
        %v1884 = vld [vmem:[#allocation14 + $0x8] sm:$0xf]
        %v1885 = vld [vmem:[#allocation14 + $0xc] sm:$0xf]
        %v1886 = vld [vmem:[#allocation14 + $0x10] sm:$0xf]
        %v1887 = vld [vmem:[#allocation14 + $0x14] sm:$0xf]
        %v1888 = vld [vmem:[#allocation14 + $0x18] sm:$0xf]
        %v1889 = vld [vmem:[#allocation14 + $0x1c] sm:$0xf]
        %v1890 = vld [vmem:[#allocation14 + $0x20] sm:$0xf]
        %v1891 = vld [vmem:[#allocation14 + $0x24] sm:$0xf]
        %v1892 = vld [vmem:[#allocation14 + $0x28] sm:$0xf]
        %v1893 = vld [vmem:[#allocation14 + $0x2c] sm:$0xf]
        %v1894 = vld [vmem:[#allocation14 + $0x30] sm:$0xf]
        %v1895 = vld [vmem:[#allocation14 + $0x34] sm:$0xf]
        %v1896 = vld [vmem:[#allocation14 + $0x38] sm:$0xf]
        %v1897 = vld [vmem:[#allocation14 + $0x3c] sm:$0xf]
        %v1898 = vld [vmem:[#allocation14 + $0x40] sm:$0xf]
        %v1899 = vld [vmem:[#allocation14 + $0x44] sm:$0xf]
        %v1900 = vld [vmem:[#allocation14 + $0x48] sm:$0xf]
        %v1901 = vld [vmem:[#allocation14 + $0x4c] sm:$0xf]
        %v1902 = vld [vmem:[#allocation14 + $0x50] sm:$0xf]
        %v1903 = vld [vmem:[#allocation14 + $0x54] sm:$0xf]
        %v1904 = vld [vmem:[#allocation14 + $0x58] sm:$0xf]
        %v1905 = vld [vmem:[#allocation14 + $0x5c] sm:$0xf]
        %v1906 = vld [vmem:[#allocation14 + $0x60] sm:$0xf]
        %v1907 = vld [vmem:[#allocation14 + $0x64] sm:$0xf]
        %v1908 = vld [vmem:[#allocation14 + $0x68] sm:$0xf]
        %v1909 = vld [vmem:[#allocation14 + $0x6c] sm:$0xf]
        %v1910 = vld [vmem:[#allocation14 + $0x70] sm:$0xf]
        %v1911 = vld [vmem:[#allocation14 + $0x74] sm:$0xf]
        %v1912 = vld [vmem:[#allocation14 + $0x78] sm:$0xf]
        %v1913 = vld [vmem:[#allocation14 + $0x7c] sm:$0xf]
        %v1914 = vld [vmem:[#allocation14 + $0x80] sm:$0xf]
        %v1915 = vld [vmem:[#allocation14 + $0x84] sm:$0xf]
        %v1916 = vld [vmem:[#allocation14 + $0x88] sm:$0xf]
        %v1917 = vld [vmem:[#allocation14 + $0x8c] sm:$0xf]
        %v1918 = vld [vmem:[#allocation14 + $0x90] sm:$0xf]
        %v1919 = vld [vmem:[#allocation14 + $0x94] sm:$0xf]
        %v1920 = vld [vmem:[#allocation14 + $0x98] sm:$0xf]
        %v1921 = vld [vmem:[#allocation14 + $0x9c] sm:$0xf]
        %v1922 = vld [vmem:[#allocation14 + $0xa0] sm:$0xf]
        %v1923 = vld [vmem:[#allocation14 + $0xa4] sm:$0xf]
        %v1924 = vld [vmem:[#allocation14 + $0xa8] sm:$0xf]
        %v1925 = vld [vmem:[#allocation14 + $0xac] sm:$0xf]
        %v1926 = vld [vmem:[#allocation14 + $0xb0] sm:$0xf]
        %v1927 = vld [vmem:[#allocation14 + $0xb4] sm:$0xf]
        %v1928 = vld [vmem:[#allocation14 + $0xb8] sm:$0xf]
        %v1929 = vld [vmem:[#allocation14 + $0xbc] sm:$0xf]
        %v1978 = vunpack.c.l.b16 %v1882
        %v1979 = vunpack.c.l.b16 %v1883
        %v1980 = vunpack.c.l.b16 %v1884
        %v1981 = vunpack.c.l.b16 %v1885
        %v1982 = vunpack.c.l.b16 %v1886
        %v1983 = vunpack.c.l.b16 %v1887
        %v1984 = vunpack.c.l.b16 %v1888
        %v1985 = vunpack.c.l.b16 %v1889
        %v1986 = vunpack.c.l.b16 %v1890
        %v1987 = vunpack.c.l.b16 %v1891
        %v1988 = vunpack.c.l.b16 %v1892
        %v1989 = vunpack.c.l.b16 %v1893
        %v1990 = vunpack.c.l.b16 %v1894
        %v1991 = vunpack.c.l.b16 %v1895
        %v1992 = vunpack.c.l.b16 %v1896
        %v1993 = vunpack.c.l.b16 %v1897
        %v1994 = vunpack.c.l.b16 %v1898
        %v1995 = vunpack.c.l.b16 %v1899
        %v1996 = vunpack.c.l.b16 %v1900
        %v1997 = vunpack.c.l.b16 %v1901
        %v1998 = vunpack.c.l.b16 %v1902
        %v1999 = vunpack.c.l.b16 %v1903
        %v2000 = vunpack.c.l.b16 %v1904
        %v2001 = vunpack.c.l.b16 %v1905
        %v2002 = vunpack.c.l.b16 %v1906
        %v2003 = vunpack.c.l.b16 %v1907
        %v2004 = vunpack.c.l.b16 %v1908
        %v2005 = vunpack.c.l.b16 %v1909
        %v2006 = vunpack.c.l.b16 %v1910
        %v2007 = vunpack.c.l.b16 %v1911
        %v2008 = vunpack.c.l.b16 %v1912
        %v2009 = vunpack.c.l.b16 %v1913
        %v2010 = vunpack.c.l.b16 %v1914
        %v2011 = vunpack.c.l.b16 %v1915
        %v2012 = vunpack.c.l.b16 %v1916
        %v2013 = vunpack.c.l.b16 %v1917
        %v2014 = vunpack.c.l.b16 %v1918
        %v2015 = vunpack.c.l.b16 %v1919
        %v2016 = vunpack.c.l.b16 %v1920
        %v2017 = vunpack.c.l.b16 %v1921
        %v2018 = vunpack.c.l.b16 %v1922
        %v2019 = vunpack.c.l.b16 %v1923
        %v2020 = vunpack.c.l.b16 %v1924
        %v2021 = vunpack.c.l.b16 %v1925
        %v2022 = vunpack.c.l.b16 %v1926
        %v2023 = vunpack.c.l.b16 %v1927
        %v2024 = vunpack.c.l.b16 %v1928
        %v2025 = vunpack.c.l.b16 %v1929
        %v2026 = vpack.c.b16 %v1979, %v1978
        %v2027 = vpack.c.b16 %v1981, %v1980
        %v2028 = vpack.c.b16 %v1983, %v1982
        %v2029 = vpack.c.b16 %v1985, %v1984
        %v2030 = vpack.c.b16 %v1987, %v1986
        %v2031 = vpack.c.b16 %v1989, %v1988
        %v2032 = vpack.c.b16 %v1991, %v1990
        %v2033 = vpack.c.b16 %v1993, %v1992
        %v2034 = vpack.c.b16 %v1995, %v1994
        %v2035 = vpack.c.b16 %v1997, %v1996
        %v2036 = vpack.c.b16 %v1999, %v1998
        %v2037 = vpack.c.b16 %v2001, %v2000
        %v2038 = vpack.c.b16 %v2003, %v2002
        %v2039 = vpack.c.b16 %v2005, %v2004
        %v2040 = vpack.c.b16 %v2007, %v2006
        %v2041 = vpack.c.b16 %v2009, %v2008
        %v2042 = vpack.c.b16 %v2011, %v2010
        %v2043 = vpack.c.b16 %v2013, %v2012
        %v2044 = vpack.c.b16 %v2015, %v2014
        %v2045 = vpack.c.b16 %v2017, %v2016
        %v2046 = vpack.c.b16 %v2019, %v2018
        %v2047 = vpack.c.b16 %v2021, %v2020
        %v2048 = vpack.c.b16 %v2023, %v2022
        %v2049 = vpack.c.b16 %v2025, %v2024
        %2074 = vmatprep.subr.bf16.mxu0 0
        %2075 = vmatpush1.bf16.msra.mxu0 %v2033
        %2076 = vmatprep.subr.bf16.mxu0 0
        %2077 = vmatpush1.bf16.msra.mxu0 %v2032
        %2078 = vmatprep.subr.bf16.mxu0 0
        %2079 = vmatpush1.bf16.msra.mxu0 %v2031
        %2080 = vmatprep.subr.bf16.mxu0 0
        %2081 = vmatpush1.bf16.msra.mxu0 %v2030
        %2082 = vmatprep.subr.bf16.mxu0 0
        %2083 = vmatpush1.bf16.msra.mxu0 %v2029
        %2084 = vmatprep.subr.bf16.mxu0 0
        %2085 = vmatpush1.bf16.msra.mxu0 %v2028
        %2086 = vmatprep.subr.bf16.mxu0 0
        %2087 = vmatpush1.bf16.msra.mxu0 %v2027
        %2088 = vmatprep.subr.bf16.mxu0 0
        %2089 = vmatpush1.bf16.msra.mxu0 %v2026
        %2090 = vmatprep.subr.bf16.mxu0 0
        %2091 = vmatpush2.bf16.msra.mxu0 %v2041
        %2092 = vmatprep.subr.bf16.mxu0 0
        %2093 = vmatpush2.bf16.msra.mxu0 %v2040
        %2094 = vmatprep.subr.bf16.mxu0 0
        %2095 = vmatpush2.bf16.msra.mxu0 %v2039
        %2096 = vmatprep.subr.bf16.mxu0 0
        %2097 = vmatpush2.bf16.msra.mxu0 %v2038
        %2098 = vmatprep.subr.bf16.mxu0 0
        %2099 = vmatpush2.bf16.msra.mxu0 %v2037
        %2100 = vmatprep.subr.bf16.mxu0 0
        %2101 = vmatpush2.bf16.msra.mxu0 %v2036
        %2102 = vmatprep.subr.bf16.mxu0 0
        %2103 = vmatpush2.bf16.msra.mxu0 %v2035
        %2104 = vmatprep.subr.bf16.mxu0 0
        %2105 = vmatpush2.bf16.msra.mxu0 %v2034
        %2106 = vmatprep.mubr.bf16.mxu0 %v1879
        %2107 = vmatmul.mubr.bf16.gmra.mxu0 %v1878
        %v2108 = vpop.f32.mrf.mxu0
        %v2109 = vadd.f32 0.0, %v2108
        %v2110 = vpop.f32.mrf.mxu0
        %v2111 = vpop.f32.mrf.mxu0
        %v2112 = vadd.f32 0.0, %v2111
        %v2113 = vpop.f32.mrf.mxu0
        %2114 = vdwg.mxu0
        %2115 = vmatprep.subr.bf16.mxu0 0
        %2116 = vmatpush1.bf16.msra.mxu0 %v2049
        %2117 = vmatprep.subr.bf16.mxu0 0
        %2118 = vmatpush1.bf16.msra.mxu0 %v2048
        %2119 = vmatprep.subr.bf16.mxu0 0
        %2120 = vmatpush1.bf16.msra.mxu0 %v2047
        %2121 = vmatprep.subr.bf16.mxu0 0
        %2122 = vmatpush1.bf16.msra.mxu0 %v2046
        %2123 = vmatprep.subr.bf16.mxu0 0
        %2124 = vmatpush1.bf16.msra.mxu0 %v2045
        %2125 = vmatprep.subr.bf16.mxu0 0
        %2126 = vmatpush1.bf16.msra.mxu0 %v2044
        %2127 = vmatprep.subr.bf16.mxu0 0
        %2128 = vmatpush1.bf16.msra.mxu0 %v2043
        %2129 = vmatprep.subr.bf16.mxu0 0
        %2130 = vmatpush1.bf16.msra.mxu0 %v2042
        %2131 = vmatprep.subr.bf16.mxu0 0
        %2132 = vmatpush2.bf16.msra.mxu0 0
        %2133 = vmatprep.subr.bf16.mxu0 0
        %2134 = vmatpush2.bf16.msra.mxu0 0
        %2135 = vmatprep.subr.bf16.mxu0 0
        %2136 = vmatpush2.bf16.msra.mxu0 0
        %2137 = vmatprep.subr.bf16.mxu0 0
        %2138 = vmatpush2.bf16.msra.mxu0 0
        %2139 = vmatprep.subr.bf16.mxu0 0
        %2140 = vmatpush2.bf16.msra.mxu0 0
        %2141 = vmatprep.subr.bf16.mxu0 0
        %2142 = vmatpush2.bf16.msra.mxu0 0
        %2143 = vmatprep.subr.bf16.mxu0 0
        %2144 = vmatpush2.bf16.msra.mxu0 0
        %2145 = vmatprep.subr.bf16.mxu0 0
        %2146 = vmatpush2.bf16.msra.mxu0 0
        %2147 = vmatprep.mubr.bf16.mxu0 0
        %2148 = vmatmul.mubr.bf16.gmra.mxu0 %v1880
        %v2149 = vpop.f32.mrf.mxu0
        %v2150 = vadd.f32 %v2109, %v2149
        %v2151 = vpop.f32.mrf.mxu0
        %v2152 = vpop.f32.mrf.mxu0
        %v2153 = vadd.f32 %v2112, %v2152
        %v2154 = vpop.f32.mrf.mxu0
        %2155 = vdwg.mxu0
        %v2157 = vlaneseq
        %v2158 = vshrl.u32 %v2157, 7
        %v2159 = vsub.s32 0, %v2158
        %v2160 = vrot.slane %v1881, %v2159
        %v2162 = vadd.f32 %v2160, %v2150
        %v2163 = vadd.f32 %v2160, %v2153
        %v2164 = vmax.f32 %v2162, 0.0
        %v2165 = vmax.f32 %v2163, 0.0
        %2166 = vst [vmem:[#allocation2 + $0x8] sm:$0xff] %v2164
        %2167 = vst [vmem:[#allocation2 + $0x10] sm:$0xff] %v2165
        %v2168 = vld [vmem:[#allocation2 + $0x7] sm:$0xff]
        %v2169 = vld [vmem:[#allocation2 + $0xf] sm:$0xff]
        %v2170 = vld [vmem:[#allocation2 + $0x9] sm:$0xff]
        %v2171 = vld [vmem:[#allocation2 + $0x11] sm:$0xff]
        %v2172 = vpack.c.bf16 %v2169, %v2168
        %v2173 = vpack.c.bf16 %v2165, %v2164
        %v2174 = vpack.c.bf16 %v2171, %v2170
        %v2175 = vld [vmem:[%s13] sm:$0x1]
        %v2176 = vld [vmem:[#allocation15] sm:$0xf]
        %v2177 = vld [vmem:[#allocation15 + $0x4] sm:$0xf]
        %v2178 = vld [vmem:[#allocation15 + $0x8] sm:$0xf]
        %v2179 = vld [vmem:[#allocation15 + $0xc] sm:$0xf]
        %v2180 = vld [vmem:[#allocation15 + $0x10] sm:$0xf]
        %v2181 = vld [vmem:[#allocation15 + $0x14] sm:$0xf]
        %v2182 = vld [vmem:[#allocation15 + $0x18] sm:$0xf]
        %v2183 = vld [vmem:[#allocation15 + $0x1c] sm:$0xf]
        %v2184 = vld [vmem:[#allocation15 + $0x20] sm:$0xf]
        %v2185 = vld [vmem:[#allocation15 + $0x24] sm:$0xf]
        %v2186 = vld [vmem:[#allocation15 + $0x28] sm:$0xf]
        %v2187 = vld [vmem:[#allocation15 + $0x2c] sm:$0xf]
        %v2188 = vld [vmem:[#allocation15 + $0x30] sm:$0xf]
        %v2189 = vld [vmem:[#allocation15 + $0x34] sm:$0xf]
        %v2190 = vld [vmem:[#allocation15 + $0x38] sm:$0xf]
        %v2191 = vld [vmem:[#allocation15 + $0x3c] sm:$0xf]
        %v2192 = vld [vmem:[#allocation15 + $0x40] sm:$0xf]
        %v2193 = vld [vmem:[#allocation15 + $0x44] sm:$0xf]
        %v2194 = vld [vmem:[#allocation15 + $0x48] sm:$0xf]
        %v2195 = vld [vmem:[#allocation15 + $0x4c] sm:$0xf]
        %v2196 = vld [vmem:[#allocation15 + $0x50] sm:$0xf]
        %v2197 = vld [vmem:[#allocation15 + $0x54] sm:$0xf]
        %v2198 = vld [vmem:[#allocation15 + $0x58] sm:$0xf]
        %v2199 = vld [vmem:[#allocation15 + $0x5c] sm:$0xf]
        %v2200 = vld [vmem:[#allocation15 + $0x60] sm:$0xf]
        %v2201 = vld [vmem:[#allocation15 + $0x64] sm:$0xf]
        %v2202 = vld [vmem:[#allocation15 + $0x68] sm:$0xf]
        %v2203 = vld [vmem:[#allocation15 + $0x6c] sm:$0xf]
        %v2204 = vld [vmem:[#allocation15 + $0x70] sm:$0xf]
        %v2205 = vld [vmem:[#allocation15 + $0x74] sm:$0xf]
        %v2206 = vld [vmem:[#allocation15 + $0x78] sm:$0xf]
        %v2207 = vld [vmem:[#allocation15 + $0x7c] sm:$0xf]
        %v2208 = vld [vmem:[#allocation15 + $0x80] sm:$0xf]
        %v2209 = vld [vmem:[#allocation15 + $0x84] sm:$0xf]
        %v2210 = vld [vmem:[#allocation15 + $0x88] sm:$0xf]
        %v2211 = vld [vmem:[#allocation15 + $0x8c] sm:$0xf]
        %v2212 = vld [vmem:[#allocation15 + $0x90] sm:$0xf]
        %v2213 = vld [vmem:[#allocation15 + $0x94] sm:$0xf]
        %v2214 = vld [vmem:[#allocation15 + $0x98] sm:$0xf]
        %v2215 = vld [vmem:[#allocation15 + $0x9c] sm:$0xf]
        %v2216 = vld [vmem:[#allocation15 + $0xa0] sm:$0xf]
        %v2217 = vld [vmem:[#allocation15 + $0xa4] sm:$0xf]
        %v2218 = vld [vmem:[#allocation15 + $0xa8] sm:$0xf]
        %v2219 = vld [vmem:[#allocation15 + $0xac] sm:$0xf]
        %v2220 = vld [vmem:[#allocation15 + $0xb0] sm:$0xf]
        %v2221 = vld [vmem:[#allocation15 + $0xb4] sm:$0xf]
        %v2222 = vld [vmem:[#allocation15 + $0xb8] sm:$0xf]
        %v2223 = vld [vmem:[#allocation15 + $0xbc] sm:$0xf]
        %v2272 = vunpack.c.l.b16 %v2176
        %v2273 = vunpack.c.l.b16 %v2177
        %v2274 = vunpack.c.l.b16 %v2178
        %v2275 = vunpack.c.l.b16 %v2179
        %v2276 = vunpack.c.l.b16 %v2180
        %v2277 = vunpack.c.l.b16 %v2181
        %v2278 = vunpack.c.l.b16 %v2182
        %v2279 = vunpack.c.l.b16 %v2183
        %v2280 = vunpack.c.l.b16 %v2184
        %v2281 = vunpack.c.l.b16 %v2185
        %v2282 = vunpack.c.l.b16 %v2186
        %v2283 = vunpack.c.l.b16 %v2187
        %v2284 = vunpack.c.l.b16 %v2188
        %v2285 = vunpack.c.l.b16 %v2189
        %v2286 = vunpack.c.l.b16 %v2190
        %v2287 = vunpack.c.l.b16 %v2191
        %v2288 = vunpack.c.l.b16 %v2192
        %v2289 = vunpack.c.l.b16 %v2193
        %v2290 = vunpack.c.l.b16 %v2194
        %v2291 = vunpack.c.l.b16 %v2195
        %v2292 = vunpack.c.l.b16 %v2196
        %v2293 = vunpack.c.l.b16 %v2197
        %v2294 = vunpack.c.l.b16 %v2198
        %v2295 = vunpack.c.l.b16 %v2199
        %v2296 = vunpack.c.l.b16 %v2200
        %v2297 = vunpack.c.l.b16 %v2201
        %v2298 = vunpack.c.l.b16 %v2202
        %v2299 = vunpack.c.l.b16 %v2203
        %v2300 = vunpack.c.l.b16 %v2204
        %v2301 = vunpack.c.l.b16 %v2205
        %v2302 = vunpack.c.l.b16 %v2206
        %v2303 = vunpack.c.l.b16 %v2207
        %v2304 = vunpack.c.l.b16 %v2208
        %v2305 = vunpack.c.l.b16 %v2209
        %v2306 = vunpack.c.l.b16 %v2210
        %v2307 = vunpack.c.l.b16 %v2211
        %v2308 = vunpack.c.l.b16 %v2212
        %v2309 = vunpack.c.l.b16 %v2213
        %v2310 = vunpack.c.l.b16 %v2214
        %v2311 = vunpack.c.l.b16 %v2215
        %v2312 = vunpack.c.l.b16 %v2216
        %v2313 = vunpack.c.l.b16 %v2217
        %v2314 = vunpack.c.l.b16 %v2218
        %v2315 = vunpack.c.l.b16 %v2219
        %v2316 = vunpack.c.l.b16 %v2220
        %v2317 = vunpack.c.l.b16 %v2221
        %v2318 = vunpack.c.l.b16 %v2222
        %v2319 = vunpack.c.l.b16 %v2223
        %v2320 = vpack.c.b16 %v2273, %v2272
        %v2321 = vpack.c.b16 %v2275, %v2274
        %v2322 = vpack.c.b16 %v2277, %v2276
        %v2323 = vpack.c.b16 %v2279, %v2278
        %v2324 = vpack.c.b16 %v2281, %v2280
        %v2325 = vpack.c.b16 %v2283, %v2282
        %v2326 = vpack.c.b16 %v2285, %v2284
        %v2327 = vpack.c.b16 %v2287, %v2286
        %v2328 = vpack.c.b16 %v2289, %v2288
        %v2329 = vpack.c.b16 %v2291, %v2290
        %v2330 = vpack.c.b16 %v2293, %v2292
        %v2331 = vpack.c.b16 %v2295, %v2294
        %v2332 = vpack.c.b16 %v2297, %v2296
        %v2333 = vpack.c.b16 %v2299, %v2298
        %v2334 = vpack.c.b16 %v2301, %v2300
        %v2335 = vpack.c.b16 %v2303, %v2302
        %v2336 = vpack.c.b16 %v2305, %v2304
        %v2337 = vpack.c.b16 %v2307, %v2306
        %v2338 = vpack.c.b16 %v2309, %v2308
        %v2339 = vpack.c.b16 %v2311, %v2310
        %v2340 = vpack.c.b16 %v2313, %v2312
        %v2341 = vpack.c.b16 %v2315, %v2314
        %v2342 = vpack.c.b16 %v2317, %v2316
        %v2343 = vpack.c.b16 %v2319, %v2318
        %2368 = vmatprep.subr.bf16.mxu0 0
        %2369 = vmatpush1.bf16.msra.mxu0 %v2327
        %2370 = vmatprep.subr.bf16.mxu0 0
        %2371 = vmatpush1.bf16.msra.mxu0 %v2326
        %2372 = vmatprep.subr.bf16.mxu0 0
        %2373 = vmatpush1.bf16.msra.mxu0 %v2325
        %2374 = vmatprep.subr.bf16.mxu0 0
        %2375 = vmatpush1.bf16.msra.mxu0 %v2324
        %2376 = vmatprep.subr.bf16.mxu0 0
        %2377 = vmatpush1.bf16.msra.mxu0 %v2323
        %2378 = vmatprep.subr.bf16.mxu0 0
        %2379 = vmatpush1.bf16.msra.mxu0 %v2322
        %2380 = vmatprep.subr.bf16.mxu0 0
        %2381 = vmatpush1.bf16.msra.mxu0 %v2321
        %2382 = vmatprep.subr.bf16.mxu0 0
        %2383 = vmatpush1.bf16.msra.mxu0 %v2320
        %2384 = vmatprep.subr.bf16.mxu0 0
        %2385 = vmatpush2.bf16.msra.mxu0 %v2335
        %2386 = vmatprep.subr.bf16.mxu0 0
        %2387 = vmatpush2.bf16.msra.mxu0 %v2334
        %2388 = vmatprep.subr.bf16.mxu0 0
        %2389 = vmatpush2.bf16.msra.mxu0 %v2333
        %2390 = vmatprep.subr.bf16.mxu0 0
        %2391 = vmatpush2.bf16.msra.mxu0 %v2332
        %2392 = vmatprep.subr.bf16.mxu0 0
        %2393 = vmatpush2.bf16.msra.mxu0 %v2331
        %2394 = vmatprep.subr.bf16.mxu0 0
        %2395 = vmatpush2.bf16.msra.mxu0 %v2330
        %2396 = vmatprep.subr.bf16.mxu0 0
        %2397 = vmatpush2.bf16.msra.mxu0 %v2329
        %2398 = vmatprep.subr.bf16.mxu0 0
        %2399 = vmatpush2.bf16.msra.mxu0 %v2328
        %2400 = vmatprep.mubr.bf16.mxu0 %v2173
        %2401 = vmatmul.mubr.bf16.gmra.mxu0 %v2172
        %v2402 = vpop.f32.mrf.mxu0
        %v2403 = vadd.f32 0.0, %v2402
        %v2404 = vpop.f32.mrf.mxu0
        %v2405 = vpop.f32.mrf.mxu0
        %v2406 = vadd.f32 0.0, %v2405
        %v2407 = vpop.f32.mrf.mxu0
        %2408 = vdwg.mxu0
        %2409 = vmatprep.subr.bf16.mxu0 0
        %2410 = vmatpush1.bf16.msra.mxu0 %v2343
        %2411 = vmatprep.subr.bf16.mxu0 0
        %2412 = vmatpush1.bf16.msra.mxu0 %v2342
        %2413 = vmatprep.subr.bf16.mxu0 0
        %2414 = vmatpush1.bf16.msra.mxu0 %v2341
        %2415 = vmatprep.subr.bf16.mxu0 0
        %2416 = vmatpush1.bf16.msra.mxu0 %v2340
        %2417 = vmatprep.subr.bf16.mxu0 0
        %2418 = vmatpush1.bf16.msra.mxu0 %v2339
        %2419 = vmatprep.subr.bf16.mxu0 0
        %2420 = vmatpush1.bf16.msra.mxu0 %v2338
        %2421 = vmatprep.subr.bf16.mxu0 0
        %2422 = vmatpush1.bf16.msra.mxu0 %v2337
        %2423 = vmatprep.subr.bf16.mxu0 0
        %2424 = vmatpush1.bf16.msra.mxu0 %v2336
        %2425 = vmatprep.subr.bf16.mxu0 0
        %2426 = vmatpush2.bf16.msra.mxu0 0
        %2427 = vmatprep.subr.bf16.mxu0 0
        %2428 = vmatpush2.bf16.msra.mxu0 0
        %2429 = vmatprep.subr.bf16.mxu0 0
        %2430 = vmatpush2.bf16.msra.mxu0 0
        %2431 = vmatprep.subr.bf16.mxu0 0
        %2432 = vmatpush2.bf16.msra.mxu0 0
        %2433 = vmatprep.subr.bf16.mxu0 0
        %2434 = vmatpush2.bf16.msra.mxu0 0
        %2435 = vmatprep.subr.bf16.mxu0 0
        %2436 = vmatpush2.bf16.msra.mxu0 0
        %2437 = vmatprep.subr.bf16.mxu0 0
        %2438 = vmatpush2.bf16.msra.mxu0 0
        %2439 = vmatprep.subr.bf16.mxu0 0
        %2440 = vmatpush2.bf16.msra.mxu0 0
        %2441 = vmatprep.mubr.bf16.mxu0 0
        %2442 = vmatmul.mubr.bf16.gmra.mxu0 %v2174
        %v2443 = vpop.f32.mrf.mxu0
        %v2444 = vadd.f32 %v2403, %v2443
        %v2445 = vpop.f32.mrf.mxu0
        %v2446 = vpop.f32.mrf.mxu0
        %v2447 = vadd.f32 %v2406, %v2446
        %v2448 = vpop.f32.mrf.mxu0
        %2449 = vdwg.mxu0
        %v2451 = vlaneseq
        %v2452 = vshrl.u32 %v2451, 7
        %v2453 = vsub.s32 0, %v2452
        %v2454 = vrot.slane %v2175, %v2453
        %v2456 = vadd.f32 %v2454, %v2444
        %v2457 = vadd.f32 %v2454, %v2447
        %v2458 = vadd.f32 %v2456, %v1868
        %v2459 = vadd.f32 %v2457, %v1869
        %v2460 = vld [vmem:[%s14] sm:$0xf]
        %v2461 = vld [vmem:[%s14 + $0x4] sm:$0xf]
        %v2462 = vld [vmem:[%s14 + $0x8] sm:$0xf]
        %v2463 = vld [vmem:[%s14 + $0xc] sm:$0xf]
        %v2464 = vpack.c.bf16 %v2459, %v2458
        %v2469 = vunpack.c.l.b16 %v2460
        %v2470 = vunpack.c.l.b16 %v2461
        %v2471 = vunpack.c.l.b16 %v2462
        %v2472 = vunpack.c.l.b16 %v2463
        %v2473 = vpack.c.b16 %v2470, %v2469
        %v2474 = vpack.c.b16 %v2472, %v2471
        %vm2475 = vcmask 130048
        %v2477 = vsel %vm2475, %v2473, 0
        %v2480 = vsel %vm2475, %v2474, 0
        %2482 = vmatprep.subr.bf16.mxu0 0
        %2483 = vmatpush1.bf16.msra.mxu0 0
        %2484 = vmatprep.subr.bf16.mxu0 0
        %2485 = vmatpush1.bf16.msra.mxu0 0
        %2486 = vmatprep.subr.bf16.mxu0 0
        %2487 = vmatpush1.bf16.msra.mxu0 0
        %2488 = vmatprep.subr.bf16.mxu0 0
        %2489 = vmatpush1.bf16.msra.mxu0 0
        %2490 = vmatprep.subr.bf16.mxu0 0
        %2491 = vmatpush1.bf16.msra.mxu0 0
        %2492 = vmatprep.subr.bf16.mxu0 0
        %2493 = vmatpush1.bf16.msra.mxu0 0
        %2494 = vmatprep.subr.bf16.mxu0 0
        %2495 = vmatpush1.bf16.msra.mxu0 0
        %2496 = vmatprep.subr.bf16.mxu0 0
        %2497 = vmatpush1.bf16.msra.mxu0 %v2464
        %2498 = vmatprep.subr.bf16.mxu0 0
        %2499 = vmatpush2.bf16.msra.mxu0 0
        %2500 = vmatprep.subr.bf16.mxu0 0
        %2501 = vmatpush2.bf16.msra.mxu0 0
        %2502 = vmatprep.subr.bf16.mxu0 0
        %2503 = vmatpush2.bf16.msra.mxu0 0
        %2504 = vmatprep.subr.bf16.mxu0 0
        %2505 = vmatpush2.bf16.msra.mxu0 0
        %2506 = vmatprep.subr.bf16.mxu0 0
        %2507 = vmatpush2.bf16.msra.mxu0 0
        %2508 = vmatprep.subr.bf16.mxu0 0
        %2509 = vmatpush2.bf16.msra.mxu0 0
        %2510 = vmatprep.subr.bf16.mxu0 0
        %2511 = vmatpush2.bf16.msra.mxu0 0
        %2512 = vmatprep.subr.bf16.mxu0 0
        %2513 = vmatpush2.bf16.msra.mxu0 0
        %2514 = vmatprep.mubr.bf16.mxu0 0
        %2515 = vmatmul.mubr.bf16.gmra.mxu0 %v2477
        %v2516 = vpop.f32.mrf.mxu0
        %v2517 = vadd.f32 0.0, %v2516
        %v2518 = vpop.f32.mrf.mxu0
        %v2519 = vpop.f32.mrf.mxu0
        %v2520 = vadd.f32 0.0, %v2519
        %v2521 = vpop.f32.mrf.mxu0
        %2522 = vmatprep.mubr.bf16.mxu0 0
        %2523 = vmatmul.mubr.bf16.gmra.mxu0 %v2480
        %v2524 = vpop.f32.mrf.mxu0
        %v2525 = vadd.f32 0.0, %v2524
        %v2526 = vpop.f32.mrf.mxu0
        %v2527 = vpop.f32.mrf.mxu0
        %v2528 = vadd.f32 0.0, %v2527
        %v2529 = vpop.f32.mrf.mxu0
        %2530 = vdwg.mxu0
        %v2531 = vpack.c.bf16 %v2520, %v2517
        %v2532 = vpack.c.bf16 %v2528, %v2525
        %v2533 = vld [vmem:[#allocation17] sm:$0xff]
        %v2534 = vld [vmem:[#allocation17 + $0x8] sm:$0xff]
        %v2535 = vld [vmem:[#allocation17 + $0x10] sm:$0xff]
        %v2536 = vld [vmem:[#allocation17 + $0x18] sm:$0xff]
        %v2537 = vld [vmem:[#allocation17 + $0x20] sm:$0xff]
        %v2538 = vld [vmem:[#allocation17 + $0x28] sm:$0xff]
        %v2539 = vld [vmem:[#allocation17 + $0x30] sm:$0xff]
        %v2540 = vld [vmem:[#allocation17 + $0x38] sm:$0xff]
        %v2541 = vld [vmem:[#allocation17 + $0x40] sm:$0xff]
        %v2542 = vld [vmem:[#allocation17 + $0x48] sm:$0xff]
        %v2543 = vld [vmem:[#allocation17 + $0x50] sm:$0xff]
        %v2544 = vld [vmem:[#allocation17 + $0x58] sm:$0xff]
        %v2545 = vld [vmem:[#allocation17 + $0x60] sm:$0xff]
        %v2546 = vld [vmem:[#allocation17 + $0x68] sm:$0xff]
        %v2547 = vld [vmem:[#allocation17 + $0x70] sm:$0xff]
        %v2548 = vld [vmem:[#allocation17 + $0x78] sm:$0xff]
        %v2565 = vunpack.c.l.b16 %v2533
        %v2566 = vunpack.c.h.b16 %v2533
        %v2567 = vunpack.c.l.b16 %v2534
        %v2568 = vunpack.c.h.b16 %v2534
        %v2569 = vunpack.c.l.b16 %v2535
        %v2570 = vunpack.c.h.b16 %v2535
        %v2571 = vunpack.c.l.b16 %v2536
        %v2572 = vunpack.c.h.b16 %v2536
        %v2573 = vunpack.c.l.b16 %v2537
        %v2574 = vunpack.c.h.b16 %v2537
        %v2575 = vunpack.c.l.b16 %v2538
        %v2576 = vunpack.c.h.b16 %v2538
        %v2577 = vunpack.c.l.b16 %v2539
        %v2578 = vunpack.c.h.b16 %v2539
        %v2579 = vunpack.c.l.b16 %v2540
        %v2580 = vunpack.c.h.b16 %v2540
        %v2581 = vunpack.c.l.b16 %v2541
        %v2582 = vunpack.c.h.b16 %v2541
        %v2583 = vunpack.c.l.b16 %v2542
        %v2584 = vunpack.c.h.b16 %v2542
        %v2585 = vunpack.c.l.b16 %v2543
        %v2586 = vunpack.c.h.b16 %v2543
        %v2587 = vunpack.c.l.b16 %v2544
        %v2588 = vunpack.c.h.b16 %v2544
        %v2589 = vunpack.c.l.b16 %v2545
        %v2590 = vunpack.c.h.b16 %v2545
        %v2591 = vunpack.c.l.b16 %v2546
        %v2592 = vunpack.c.h.b16 %v2546
        %v2593 = vunpack.c.l.b16 %v2547
        %v2594 = vunpack.c.h.b16 %v2547
        %v2595 = vunpack.c.l.b16 %v2548
        %v2596 = vunpack.c.h.b16 %v2548
        %v2597 = vpack.c.b16 %v2567, %v2565
        %v2598 = vpack.c.b16 %v2568, %v2566
        %v2599 = vpack.c.b16 %v2571, %v2569
        %v2600 = vpack.c.b16 %v2572, %v2570
        %v2601 = vpack.c.b16 %v2575, %v2573
        %v2602 = vpack.c.b16 %v2576, %v2574
        %v2603 = vpack.c.b16 %v2579, %v2577
        %v2604 = vpack.c.b16 %v2580, %v2578
        %v2605 = vpack.c.b16 %v2583, %v2581
        %v2606 = vpack.c.b16 %v2584, %v2582
        %v2607 = vpack.c.b16 %v2587, %v2585
        %v2608 = vpack.c.b16 %v2588, %v2586
        %v2609 = vpack.c.b16 %v2591, %v2589
        %v2610 = vpack.c.b16 %v2592, %v2590
        %v2611 = vpack.c.b16 %v2595, %v2593
        %v2612 = vpack.c.b16 %v2596, %v2594
        %2629 = vmatprep.subr.bf16.mxu0 %v2612
        %2630 = vmatpush1.bf16.msra.mxu0 %v2611
        %2631 = vmatprep.subr.bf16.mxu0 %v2610
        %2632 = vmatpush1.bf16.msra.mxu0 %v2609
        %2633 = vmatprep.subr.bf16.mxu0 %v2608
        %2634 = vmatpush1.bf16.msra.mxu0 %v2607
        %2635 = vmatprep.subr.bf16.mxu0 %v2606
        %2636 = vmatpush1.bf16.msra.mxu0 %v2605
        %2637 = vmatprep.subr.bf16.mxu0 %v2604
        %2638 = vmatpush1.bf16.msra.mxu0 %v2603
        %2639 = vmatprep.subr.bf16.mxu0 %v2602
        %2640 = vmatpush1.bf16.msra.mxu0 %v2601
        %2641 = vmatprep.subr.bf16.mxu0 %v2600
        %2642 = vmatpush1.bf16.msra.mxu0 %v2599
        %2643 = vmatprep.subr.bf16.mxu0 %v2598
        %2644 = vmatpush1.bf16.msra.mxu0 %v2597
        %2645 = vmatprep.subr.bf16.mxu0 0
        %2646 = vmatpush2.bf16.msra.mxu0 0
        %2647 = vmatprep.subr.bf16.mxu0 0
        %2648 = vmatpush2.bf16.msra.mxu0 0
        %2649 = vmatprep.subr.bf16.mxu0 0
        %2650 = vmatpush2.bf16.msra.mxu0 0
        %2651 = vmatprep.subr.bf16.mxu0 0
        %2652 = vmatpush2.bf16.msra.mxu0 0
        %2653 = vmatprep.subr.bf16.mxu0 0
        %2654 = vmatpush2.bf16.msra.mxu0 0
        %2655 = vmatprep.subr.bf16.mxu0 0
        %2656 = vmatpush2.bf16.msra.mxu0 0
        %2657 = vmatprep.subr.bf16.mxu0 0
        %2658 = vmatpush2.bf16.msra.mxu0 0
        %2659 = vmatprep.subr.bf16.mxu0 0
        %2660 = vmatpush2.bf16.msra.mxu0 0
        %2661 = vmatprep.mubr.bf16.mxu0 0
        %2662 = vmatmul.mubr.bf16.gmra.mxu0 %v2531
        %v2663 = vpop.f32.mrf.mxu0
        %v2664 = vadd.f32 0.0, %v2663
        %v2665 = vpop.f32.mrf.mxu0
        %v2666 = vadd.f32 0.0, %v2665
        %v2667 = vpop.f32.mrf.mxu0
        %v2668 = vadd.f32 0.0, %v2667
        %v2669 = vpop.f32.mrf.mxu0
        %v2670 = vadd.f32 0.0, %v2669
        %2671 = vmatprep.mubr.bf16.mxu0 0
        %2672 = vmatmul.mubr.bf16.gmra.mxu0 %v2532
        %v2673 = vpop.f32.mrf.mxu0
        %v2674 = vadd.f32 0.0, %v2673
        %v2675 = vpop.f32.mrf.mxu0
        %v2676 = vadd.f32 0.0, %v2675
        %v2677 = vpop.f32.mrf.mxu0
        %v2678 = vadd.f32 0.0, %v2677
        %v2679 = vpop.f32.mrf.mxu0
        %v2680 = vadd.f32 0.0, %v2679
        %2681 = vdwg.mxu0
        %2682 = vst [vmem:[%s680] sm:$0xff] %v2664
        %2683 = vst [vmem:[%s680 + $0x8] sm:$0xff] %v2666
        %2684 = vst [vmem:[%s680 + $0x10] sm:$0xff] %v2668
        %2685 = vst [vmem:[%s680 + $0x18] sm:$0xff] %v2670
        %2686 = vst [vmem:[%s680 + $0x20] sm:$0xff] %v2674
        %2687 = vst [vmem:[%s680 + $0x28] sm:$0xff] %v2676
        %2688 = vst [vmem:[%s680 + $0x30] sm:$0xff] %v2678
        %2689 = vst [vmem:[%s680 + $0x38] sm:$0xff] %v2680
        %s2690 = sand.u32 %s393, 1
        %s2691 = scalar_lea.sflag [#allocation5], %s2690
        %s2692 = sand.u32 %s393, 1
        %s2693 = smul.addr %s2692, 64
        %s2694 = scalar_lea.vmem [#allocation18], %s2693
        // Predicated region
        $region121: #{tpu_custom_call.1} parent=83 // pred_check
          %p2695 = pneg %p403
        $region122: #{tpu_custom_call.1} parent=83 // pred_check_branch
          %2697 = sbr.rel (%p2695) target = $region124
        $region123: #{tpu_custom_call.1} parent=83 // pred_region
          %s2699 = ssub.s32 1024, 1024
          %2700 = vsyncadd %s2691, %s2699
          %s2701 = smul.addr %s39, 8
          %s2702 = smul.addr %s2701, 128
          %s2703 = scalar_lea.hbm %s16, %s2702
          %s2704 = sshll.u32 %s2694, 4
          %s2705 = int_to_ptr.vmem [resolvable:$true] %s2704
          %2710 = dma.vmem_to_hbm [thread:$0]  %s2705, 1024, %s2703, %s2691, 256, 256, 16
        $region124: #{tpu_custom_call.1} parent=83 // pred_fallthru
          _
      $region84: #{tpu_custom_call.1} parent=5 // pred_fallthru
        _
      %p2711 = scmp.le.s32.totalorder 2, %s34
      // Predicated region
      $region125: #{tpu_custom_call.1} parent=5 // pred_check
        %p2712 = pneg %p2711
      $region126: #{tpu_custom_call.1} parent=5 // pred_check_branch
        %2714 = sbr.rel (%p2712) target = $region128
      $region127: #{tpu_custom_call.1} parent=5 // pred_region
        %s2715 = ssub.s32 %s34, 2
        // Predicated region
        $region129: #{tpu_custom_call.1} parent=127 // pred_check
          %p2716 = pneg %p409
        $region130: #{tpu_custom_call.1} parent=127 // pred_check_branch
          %2718 = sbr.rel (%p2716) target = $region132
        $region131: #{tpu_custom_call.1} parent=127 // pred_region
          %s2719 = sand.u32 %s394, 1
          %s2720 = scalar_lea.sflag [#allocation5], %s2719
          %s2721 = sand.u32 %s394, 1
          %s2722 = smul.addr %s2721, 64
          %s2723 = scalar_lea.vmem [#allocation18], %s2722
          %2724 = dma.done %s2720, 1024
        $region132: #{tpu_custom_call.1} parent=127 // pred_fallthru
          _
      $region128: #{tpu_custom_call.1} parent=5 // pred_fallthru
        _
    $region6: #{tpu_custom_call.1} parent=1 // loop_footer
      %s38 = sadd.s32 1, %s34
    $region7: #{tpu_custom_call.1} parent=1 // loop_footer_branch
      %33 = sbr.rel target = $region3
    $region8: #{tpu_custom_call.1} parent=1 // loop_exit
      _
    %2725 = vsyncpa [#allocation4], 1
    %s2726 = scalar_lea.sflag [#allocation4], 1
    %2727 = vsyncpa %s2726, 1
    %2728 = vsyncpa [#allocation7], 1
    %s2729 = scalar_lea.sflag [#allocation7], 1
    %2730 = vsyncpa %s2729, 1
    %2731 = vsyncpa [#allocation10], 1
    %2732 = vsyncpa [#allocation13], 1
    %2733 = vsyncpa [#allocation16], 1
    %2734 = vsyncpa [#allocation5], 1
    %s2735 = scalar_lea.sflag [#allocation5], 1
    %2736 = vsyncpa %s2735, 1

</llo_original>
